<compile_context>
chip_gen: v6e
topology: v6e:2x2x1
jax: 0.10.0
libtpu: 0.0.40
codegen_flags: <defaults>
</compile_context>

<pallas_src>
import numpy as np

import jax
import jax.numpy as jnp
from jax import lax
from jax.experimental import pallas as pl
from jax.experimental.pallas import tpu as pltpu


def _bilinear_matrix(n_in: int, n_out: int) -> np.ndarray:
    """Interpolation matrix M (n_out, n_in) for UpsamplingBilinear2d (align_corners=True)."""
    M = np.zeros((n_out, n_in), dtype=np.float32)
    if n_out == 1:
        M[0, 0] = 1.0
        return M
    scale = (n_in - 1) / (n_out - 1)
    for i in range(n_out):
        src = i * scale
        lo = min(int(np.floor(src)), n_in - 1)
        hi = min(lo + 1, n_in - 1)
        w = np.float32(src - lo)
        M[i, lo] += 1.0 - w
        M[i, hi] += w
    return M


def _make_kernel(cin, cout, H, W, Ho, Wo, BT, use_norm, eps):
    HW = H * W
    HoWo = Ho * Wo
    SEG = HW + W            # per-image patch-column stride (last W columns are junk)
    M = BT * SEG            # patch columns per grid step
    K = 9 * cin

    def kernel(x_ref, w_ref, d_ref, alpha_ref, gamma_ref, beta_ref, out_ref,
               xflat_ref, patch_ref):
        # x_ref:     (BT, cin, H*W)     B_tile unpadded images, rows flattened (VMEM)
        # w_ref:     (cout, 9*cin)      conv weights, tap-major / channel-minor (VMEM, 1-buf)
        # d_ref:     (H*W, Ho*Wo)       fused kron(A, Bw) bilinear-downsample matrix (VMEM, 1-buf)
        # alpha_ref: (1,)               PReLU slope (SMEM scalar)
        # gamma/beta:(cout, 1)          LayerNorm affine params (VMEM)
        # out_ref:   (cout, BT*Ho*Wo)   lane-dense output block
        # xflat_ref: (cin, L)           flat planes: [1 lead][W zeros][H*W data][W zeros][...]
        # patch_ref: (9*cin, M)         im2col scratch

        # ---- zero halo: only the top/bottom pad-row strips (shared between images) --------
        zrow = jnp.zeros((cin, W), jnp.float32)
        for k in range(BT + 1):
            xflat_ref[:, 1 + k * SEG: 1 + k * SEG + W] = zrow
        # ---- interior: one bulk store per folded image (no per-row loop) -------------------
        for b in range(BT):
            base = 1 + b * SEG + W
            xflat_ref[:, base: base + HW] = x_ref[b]
        # (position 0 and the W+1 tail elements only ever feed masked / junk lanes.)

        # ---- im2col: 9 lane-shifted slices written straight into the patches scratch -------
        # The left/right zero halo is emulated by masking the single wrapped column of the
        # dx=0 / dx=2 taps (output col 0 / W-1 respectively).
        col = lax.broadcasted_iota(jnp.int32, (cin, M), 1) % W
        keep_l = col != 0
        keep_r = col != (W - 1)
        for dy in range(3):
            for dx in range(3):
                t = dy * 3 + dx
                start = dy * W + dx
                tap = xflat_ref[:, start: start + M]
                if dx == 0:
                    tap = jnp.where(keep_l, tap, 0.0)
                elif dx == 2:
                    tap = jnp.where(keep_r, tap, 0.0)
                patch_ref[t * cin:(t + 1) * cin, :] = tap

        # ---- 3x3 conv: ONE MXU matmul over the whole batch fold ----------------------------
        conv = jnp.dot(w_ref[...], patch_ref[...],
                       preferred_element_type=jnp.float32)          # (cout, M)

        alpha = alpha_ref[0]
        if use_norm:
            gam = gamma_ref[...]
            bet = beta_ref[...]

        # ---- per folded image: bilinear x0.5 (fused matrix), PReLU, LayerNorm ---------------
        for b in range(BT):
            seg = conv[:, b * SEG: b * SEG + HW]                     # drop the W junk columns
            y = jnp.dot(seg, d_ref[...],
                        preferred_element_type=jnp.float32)          # (cout, Ho*Wo)
            y = jnp.where(y >= 0.0, y, alpha * y)                    # PReLU
            if use_norm:                                             # channels-first LayerNorm
                u = jnp.mean(y, axis=0, keepdims=True)
                ex2 = jnp.mean(y * y, axis=0, keepdims=True)
                var = jnp.maximum(ex2 - u * u, 0.0)                  # one-pass biased variance
                y = (y - u) * lax.rsqrt(var + eps)
                y = gam * y + bet
            out_ref[:, b * HoWo:(b + 1) * HoWo] = y.astype(out_ref.dtype)

    return kernel


def norm_downsample(x_nchw, conv_w, prelu_alpha, ln_weight, ln_bias,
                    *, scale=0.5, use_norm=False, eps=1e-6):
    """Pallas implementation of NormDownsample.forward.
    x_nchw: (B, Cin, H, W) -> (B, Cout, Ho, Wo).
    eps defaults to 1e-6, matching the module's custom LayerNorm default."""
    B, cin, H, W = x_nchw.shape
    cout = conv_w.shape[0]
    Ho, Wo = int(H * scale), int(W * scale)        # PyTorch floor semantics
    HW, HoWo = H * W, Ho * Wo
    K = 9 * cin

    # --- batch fold: smallest divisor of B that makes the output block >= 128 lanes --------
    BT = B
    for bt in range(1, B + 1):
        if B % bt == 0 and bt * HoWo >= 128:
            BT = bt
            break
    G = B // BT
    SEG = HW + W
    M = BT * SEG
    L = M + 2 * W + 2                              # flat-plane scratch length

    # --- host-side constants (tiny, computed once) ------------------------------------------
    A = _bilinear_matrix(H, Ho)                    # (Ho, H)
    Bm = _bilinear_matrix(W, Wo)                   # (Wo, W)
    Dr = jnp.asarray(np.kron(A, Bm).T)             # (H*W, Ho*Wo); Dr[oy*W+ox, o*Wo+p]=A[o,oy]*Bm[p,ox]
    # Conv weights tap-major / channel-minor so row index of patches is t*cin + ic.
    w_mat = jnp.asarray(conv_w, jnp.float32).transpose(0, 2, 3, 1).reshape(cout, K)

    kernel = _make_kernel(cin, cout, H, W, Ho, Wo, BT, use_norm, float(eps))

    # Explicit VMEM budget (review item): scratches + pipelined blocks + constants, w/ headroom.
    est = 4 * (cin * L + K * M) \
        + 4 * 2 * (BT * cin * HW) \
        + 4 * (HW * HoWo + cout * K + 2 * cout + 1) \
        + 4 * 2 * (cout * BT * HoWo)
    vmem_limit = int(min(64 << 20, max(8 << 20, 3 * est)))

    out = pl.pallas_call(
        kernel,
        out_shape=jax.ShapeDtypeStruct((G, cout, BT * HoWo), jnp.float32),
        grid=(G,),
        in_specs=[
            pl.BlockSpec((BT, cin, HW), lambda g: (g, 0, 0)),              # folded input images
            pl.BlockSpec((cout, K), lambda g: (0, 0),
                         pipeline_mode=pl.Buffered(1)),                    # conv weights (1-buf)
            pl.BlockSpec((HW, HoWo), lambda g: (0, 0),
                         pipeline_mode=pl.Buffered(1)),                    # downsample matrix (1-buf)
            pl.BlockSpec(memory_space=pltpu.MemorySpace.SMEM),             # PReLU alpha (scalar)
            pl.BlockSpec((cout, 1), lambda g: (0, 0)),                     # LayerNorm gamma
            pl.BlockSpec((cout, 1), lambda g: (0, 0)),                     # LayerNorm beta
        ],
        out_specs=pl.BlockSpec((None, cout, BT * HoWo), lambda g: (g, 0, 0)),
        scratch_shapes=[pltpu.VMEM((cin, L), jnp.float32),                 # flat padded planes
                        pltpu.VMEM((K, M), jnp.float32)],                  # im2col patches
        compiler_params=pltpu.CompilerParams(
            dimension_semantics=("parallel",),
            vmem_limit_bytes=vmem_limit),
    )(x_nchw.astype(jnp.float32).reshape(B, cin, HW), w_mat, Dr,
      prelu_alpha.astype(jnp.float32),
      ln_weight.astype(jnp.float32).reshape(cout, 1),
      ln_bias.astype(jnp.float32).reshape(cout, 1))

    # (G, cout, BT*Ho*Wo) -> (B, cout, Ho, Wo): wrapper-side layout plumbing only.
    out = out.reshape(G, cout, BT, Ho, Wo).transpose(0, 2, 1, 3, 4).reshape(B, cout, Ho, Wo)
    return out


def _reference(x, conv_w, prelu_alpha, ln_weight, ln_bias, *, scale=0.5, use_norm=False, eps=1e-6):
    """Pure-JAX reference mirroring the PyTorch forward, for validation."""
    B, cin, H, W = x.shape
    Ho, Wo = int(H * scale), int(W * scale)
    y = lax.conv_general_dilated(x, conv_w, window_strides=(1, 1),
                                 padding=((1, 1), (1, 1)),
                                 dimension_numbers=("NCHW", "OIHW", "NCHW"))
    A = jnp.asarray(_bilinear_matrix(H, Ho))
    Bm = jnp.asarray(_bilinear_matrix(W, Wo))
    y = jnp.einsum("oh,bchw->bcow", A, y)
    y = jnp.einsum("pw,bcow->bcop", Bm, y)
    y = jnp.where(y >= 0, y, prelu_alpha[0] * y)
    if use_norm:
        u = y.mean(1, keepdims=True)
        s = ((y - u) ** 2).mean(1, keepdims=True)
        y = (y - u) / jnp.sqrt(s + eps)
        y = ln_weight[None, :, None, None] * y + ln_bias[None, :, None, None]
    return y


if __name__ == "__main__":
    key = jax.random.PRNGKey(0)
    k1, k2 = jax.random.split(key)

    B, in_ch, out_ch, H, W = 4, 4, 8, 16, 16
    x = jax.random.normal(k1, (B, in_ch, H, W), dtype=jnp.float32)

    # Deterministic synthetic parameters (matching module __init__ shapes/defaults).
    conv_w = 0.1 * jax.random.normal(k2, (out_ch, in_ch, 3, 3), dtype=jnp.float32)
    prelu_alpha = jnp.array([0.25], dtype=jnp.float32)      # nn.PReLU() default
    ln_weight = jnp.ones((out_ch,), dtype=jnp.float32)       # LayerNorm weight
    ln_bias = jnp.zeros((out_ch,), dtype=jnp.float32)        # LayerNorm bias

    ok = True
    for use_norm in (False, True):
        out = jax.block_until_ready(
            norm_downsample(x, conv_w, prelu_alpha, ln_weight, ln_bias,
                            scale=0.5, use_norm=use_norm))
        ref = jax.block_until_ready(
            _reference(x, conv_w, prelu_alpha, ln_weight, ln_bias,
                       scale=0.5, use_norm=use_norm))
        if out.shape != (B, out_ch, H // 2, W // 2):
            ok = False
        if not np.allclose(np.asarray(out), np.asarray(ref), rtol=1e-4, atol=1e-4):
            ok = False

    if ok:
        print("KERNEL_OK")
    else:
        print("MISMATCH")
</pallas_src>

<mosaic_0001>
module attributes {stable_mosaic.version = 11 : i64} {
  func.func @kernel(%arg0: i32, %arg1: memref<2x4x256xf32, #tpu.memory_space<vmem>>, %arg2: memref<8x36xf32, #tpu.memory_space<vmem>>, %arg3: memref<256x64xf32, #tpu.memory_space<vmem>>, %arg4: memref<1xf32, #tpu.memory_space<smem>>, %arg5: memref<8x1xf32, #tpu.memory_space<vmem>>, %arg6: memref<8x1xf32, #tpu.memory_space<vmem>>, %arg7: memref<1x8x128xf32, #tpu.memory_space<vmem>>, %arg8: memref<4x578xf32, #tpu.memory_space<vmem>>, %arg9: memref<36x544xf32, #tpu.memory_space<vmem>>) attributes {dimension_semantics = [#tpu.dimension_semantics<parallel>], iteration_bounds = array<i64: 2>, scalar_prefetch = 0 : i64, scratch_operands = 2 : i64, tpu.core_type = #tpu.core_type<tc>, window_params = [{transform_indices = @transform_0, window_bounds = array<i64: 2, 4, 256>}, {pipeline_mode = #tpu.pipeline_mode<synchronous>, transform_indices = @transform_1, window_bounds = array<i64: 8, 36>}, {pipeline_mode = #tpu.pipeline_mode<synchronous>, transform_indices = @transform_2, window_bounds = array<i64: 256, 64>}, {transform_indices = @transform_3, window_bounds = array<i64: 1>}, {pipeline_mode = #tpu.pipeline_mode<synchronous>, transform_indices = @transform_4, window_bounds = array<i64: 8, 1>}, {pipeline_mode = #tpu.pipeline_mode<synchronous>, transform_indices = @transform_5, window_bounds = array<i64: 8, 1>}, {transform_indices = @transform_6, window_bounds = array<i64: 1, 8, 128>}]} {
    %cst = arith.constant 0.000000e+00 : f32
    %0 = vector.broadcast %cst : f32 to vector<4x16xf32>
    %c0 = arith.constant 0 : index
    %c1 = arith.constant 1 : index
    %1 = vector.load %arg8[%c0, %c1] : memref<4x578xf32, #tpu.memory_space<vmem>>, vector<4x16xf32>
    tpu.vector_store %arg8[%c0, %c1], %0 {strides = array<i32>} : memref<4x578xf32, #tpu.memory_space<vmem>>, vector<4x16xf32>,
    %c0_0 = arith.constant 0 : index
    %c273 = arith.constant 273 : index
    %2 = vector.load %arg8[%c0_0, %c273] : memref<4x578xf32, #tpu.memory_space<vmem>>, vector<4x16xf32>
    tpu.vector_store %arg8[%c0_0, %c273], %0 {strides = array<i32>} : memref<4x578xf32, #tpu.memory_space<vmem>>, vector<4x16xf32>,
    %c0_1 = arith.constant 0 : index
    %c545 = arith.constant 545 : index
    %3 = vector.load %arg8[%c0_1, %c545] : memref<4x578xf32, #tpu.memory_space<vmem>>, vector<4x16xf32>
    tpu.vector_store %arg8[%c0_1, %c545], %0 {strides = array<i32>} : memref<4x578xf32, #tpu.memory_space<vmem>>, vector<4x16xf32>,
    %c0_2 = arith.constant 0 : index
    %c0_3 = arith.constant 0 : index
    %c0_4 = arith.constant 0 : index
    %4 = vector.load %arg1[%c0_2, %c0_3, %c0_4] : memref<2x4x256xf32, #tpu.memory_space<vmem>>, vector<1x4x256xf32>
    %5 = vector.shape_cast %4 : vector<1x4x256xf32> to vector<4x256xf32>
    %c0_5 = arith.constant 0 : index
    %c17 = arith.constant 17 : index
    %6 = vector.load %arg8[%c0_5, %c17] : memref<4x578xf32, #tpu.memory_space<vmem>>, vector<4x256xf32>
    tpu.vector_store %arg8[%c0_5, %c17], %5 {strides = array<i32>} : memref<4x578xf32, #tpu.memory_space<vmem>>, vector<4x256xf32>,
    %c1_6 = arith.constant 1 : index
    %c0_7 = arith.constant 0 : index
    %c0_8 = arith.constant 0 : index
    %7 = vector.load %arg1[%c1_6, %c0_7, %c0_8] : memref<2x4x256xf32, #tpu.memory_space<vmem>>, vector<1x4x256xf32>
    %8 = vector.shape_cast %7 : vector<1x4x256xf32> to vector<4x256xf32>
    %c0_9 = arith.constant 0 : index
    %c289 = arith.constant 289 : index
    %9 = vector.load %arg8[%c0_9, %c289] : memref<4x578xf32, #tpu.memory_space<vmem>>, vector<4x256xf32>
    tpu.vector_store %arg8[%c0_9, %c289], %8 {strides = array<i32>} : memref<4x578xf32, #tpu.memory_space<vmem>>, vector<4x256xf32>,
    %10 = tpu.iota {dimensions = array<i32: 1>} : vector<4x544xi32>
    %c16_i32 = arith.constant 16 : i32
    %c0_i32 = arith.constant 0 : i32
    %11 = arith.cmpi eq, %c16_i32, %c0_i32 : i32
    %c1_i32 = arith.constant 1 : i32
    %12 = arith.select %11, %c1_i32, %c16_i32 : i32
    %13 = vector.broadcast %12 : i32 to vector<4x544xi32>
    %14 = arith.remsi %10, %13 : vector<4x544xi32>
    %c0_i32_10 = arith.constant 0 : i32
    %15 = vector.broadcast %c0_i32_10 : i32 to vector<4x544xi32>
    %16 = arith.cmpi ne, %14, %15 : vector<4x544xi32>
    %c0_i32_11 = arith.constant 0 : i32
    %17 = vector.broadcast %c0_i32_11 : i32 to vector<4x544xi32>
    %18 = arith.cmpi slt, %14, %17 : vector<4x544xi32>
    %c0_i32_12 = arith.constant 0 : i32
    %19 = arith.cmpi slt, %12, %c0_i32_12 : i32
    %20 = vector.broadcast %19 : i1 to vector<4x544xi1>
    %21 = vector.broadcast %20 : vector<4x544xi1> to vector<4x544xi1>
    %22 = arith.xori %18, %21 : vector<4x544xi1>
    %23 = arith.andi %22, %16 : vector<4x544xi1>
    %24 = vector.broadcast %12 : i32 to vector<4x544xi32>
    %25 = arith.addi %14, %24 : vector<4x544xi32>
    %26 = arith.select %23, %25, %14 : vector<4x544xi1>, vector<4x544xi32>
    %c0_i32_13 = arith.constant 0 : i32
    %27 = vector.broadcast %c0_i32_13 : i32 to vector<4x544xi32>
    %28 = arith.cmpi ne, %26, %27 : vector<4x544xi32>
    %c15_i32 = arith.constant 15 : i32
    %29 = vector.broadcast %c15_i32 : i32 to vector<4x544xi32>
    %30 = arith.cmpi ne, %26, %29 : vector<4x544xi32>
    %c0_14 = arith.constant 0 : index
    %c0_15 = arith.constant 0 : index
    %31 = vector.load %arg8[%c0_14, %c0_15] : memref<4x578xf32, #tpu.memory_space<vmem>>, vector<4x544xf32>
    %cst_16 = arith.constant 0.000000e+00 : f32
    %32 = vector.broadcast %cst_16 : f32 to vector<4x544xf32>
    %33 = arith.select %28, %31, %32 : vector<4x544xi1>, vector<4x544xf32>
    %c0_17 = arith.constant 0 : index
    %c0_18 = arith.constant 0 : index
    %34 = vector.load %arg9[%c0_17, %c0_18] : memref<36x544xf32, #tpu.memory_space<vmem>>, vector<4x544xf32>
    tpu.vector_store %arg9[%c0_17, %c0_18], %33 {strides = array<i32>} : memref<36x544xf32, #tpu.memory_space<vmem>>, vector<4x544xf32>,
    %c0_19 = arith.constant 0 : index
    %c1_20 = arith.constant 1 : index
    %35 = vector.load %arg8[%c0_19, %c1_20] : memref<4x578xf32, #tpu.memory_space<vmem>>, vector<4x544xf32>
    %c4 = arith.constant 4 : index
    %c0_21 = arith.constant 0 : index
    %36 = vector.load %arg9[%c4, %c0_21] : memref<36x544xf32, #tpu.memory_space<vmem>>, vector<4x544xf32>
    tpu.vector_store %arg9[%c4, %c0_21], %35 {strides = array<i32>} : memref<36x544xf32, #tpu.memory_space<vmem>>, vector<4x544xf32>,
    %c0_22 = arith.constant 0 : index
    %c2 = arith.constant 2 : index
    %37 = vector.load %arg8[%c0_22, %c2] : memref<4x578xf32, #tpu.memory_space<vmem>>, vector<4x544xf32>
    %cst_23 = arith.constant 0.000000e+00 : f32
    %38 = vector.broadcast %cst_23 : f32 to vector<4x544xf32>
    %39 = arith.select %30, %37, %38 : vector<4x544xi1>, vector<4x544xf32>
    %c8 = arith.constant 8 : index
    %c0_24 = arith.constant 0 : index
    %40 = vector.load %arg9[%c8, %c0_24] : memref<36x544xf32, #tpu.memory_space<vmem>>, vector<4x544xf32>
    tpu.vector_store %arg9[%c8, %c0_24], %39 {strides = array<i32>} : memref<36x544xf32, #tpu.memory_space<vmem>>, vector<4x544xf32>,
    %c0_25 = arith.constant 0 : index
    %c16 = arith.constant 16 : index
    %41 = vector.load %arg8[%c0_25, %c16] : memref<4x578xf32, #tpu.memory_space<vmem>>, vector<4x544xf32>
    %cst_26 = arith.constant 0.000000e+00 : f32
    %42 = vector.broadcast %cst_26 : f32 to vector<4x544xf32>
    %43 = arith.select %28, %41, %42 : vector<4x544xi1>, vector<4x544xf32>
    %c12 = arith.constant 12 : index
    %c0_27 = arith.constant 0 : index
    %44 = vector.load %arg9[%c12, %c0_27] : memref<36x544xf32, #tpu.memory_space<vmem>>, vector<4x544xf32>
    tpu.vector_store %arg9[%c12, %c0_27], %43 {strides = array<i32>} : memref<36x544xf32, #tpu.memory_space<vmem>>, vector<4x544xf32>,
    %c0_28 = arith.constant 0 : index
    %c17_29 = arith.constant 17 : index
    %45 = vector.load %arg8[%c0_28, %c17_29] : memref<4x578xf32, #tpu.memory_space<vmem>>, vector<4x544xf32>
    %c16_30 = arith.constant 16 : index
    %c0_31 = arith.constant 0 : index
    %46 = vector.load %arg9[%c16_30, %c0_31] : memref<36x544xf32, #tpu.memory_space<vmem>>, vector<4x544xf32>
    tpu.vector_store %arg9[%c16_30, %c0_31], %45 {strides = array<i32>} : memref<36x544xf32, #tpu.memory_space<vmem>>, vector<4x544xf32>,
    %c0_32 = arith.constant 0 : index
    %c18 = arith.constant 18 : index
    %47 = vector.load %arg8[%c0_32, %c18] : memref<4x578xf32, #tpu.memory_space<vmem>>, vector<4x544xf32>
    %cst_33 = arith.constant 0.000000e+00 : f32
    %48 = vector.broadcast %cst_33 : f32 to vector<4x544xf32>
    %49 = arith.select %30, %47, %48 : vector<4x544xi1>, vector<4x544xf32>
    %c20 = arith.constant 20 : index
    %c0_34 = arith.constant 0 : index
    %50 = vector.load %arg9[%c20, %c0_34] : memref<36x544xf32, #tpu.memory_space<vmem>>, vector<4x544xf32>
    tpu.vector_store %arg9[%c20, %c0_34], %49 {strides = array<i32>} : memref<36x544xf32, #tpu.memory_space<vmem>>, vector<4x544xf32>,
    %c0_35 = arith.constant 0 : index
    %c32 = arith.constant 32 : index
    %51 = vector.load %arg8[%c0_35, %c32] : memref<4x578xf32, #tpu.memory_space<vmem>>, vector<4x544xf32>
    %cst_36 = arith.constant 0.000000e+00 : f32
    %52 = vector.broadcast %cst_36 : f32 to vector<4x544xf32>
    %53 = arith.select %28, %51, %52 : vector<4x544xi1>, vector<4x544xf32>
    %c24 = arith.constant 24 : index
    %c0_37 = arith.constant 0 : index
    %54 = vector.load %arg9[%c24, %c0_37] : memref<36x544xf32, #tpu.memory_space<vmem>>, vector<4x544xf32>
    tpu.vector_store %arg9[%c24, %c0_37], %53 {strides = array<i32>} : memref<36x544xf32, #tpu.memory_space<vmem>>, vector<4x544xf32>,
    %c0_38 = arith.constant 0 : index
    %c33 = arith.constant 33 : index
    %55 = vector.load %arg8[%c0_38, %c33] : memref<4x578xf32, #tpu.memory_space<vmem>>, vector<4x544xf32>
    %c28 = arith.constant 28 : index
    %c0_39 = arith.constant 0 : index
    %56 = vector.load %arg9[%c28, %c0_39] : memref<36x544xf32, #tpu.memory_space<vmem>>, vector<4x544xf32>
    tpu.vector_store %arg9[%c28, %c0_39], %55 {strides = array<i32>} : memref<36x544xf32, #tpu.memory_space<vmem>>, vector<4x544xf32>,
    %c0_40 = arith.constant 0 : index
    %c34 = arith.constant 34 : index
    %57 = vector.load %arg8[%c0_40, %c34] : memref<4x578xf32, #tpu.memory_space<vmem>>, vector<4x544xf32>
    %cst_41 = arith.constant 0.000000e+00 : f32
    %58 = vector.broadcast %cst_41 : f32 to vector<4x544xf32>
    %59 = arith.select %30, %57, %58 : vector<4x544xi1>, vector<4x544xf32>
    %c32_42 = arith.constant 32 : index
    %c0_43 = arith.constant 0 : index
    %60 = vector.load %arg9[%c32_42, %c0_43] : memref<36x544xf32, #tpu.memory_space<vmem>>, vector<4x544xf32>
    tpu.vector_store %arg9[%c32_42, %c0_43], %59 {strides = array<i32>} : memref<36x544xf32, #tpu.memory_space<vmem>>, vector<4x544xf32>,
    %c0_44 = arith.constant 0 : index
    %c0_45 = arith.constant 0 : index
    %61 = vector.load %arg2[%c0_44, %c0_45] : memref<8x36xf32, #tpu.memory_space<vmem>>, vector<8x36xf32>
    %c0_46 = arith.constant 0 : index
    %c0_47 = arith.constant 0 : index
    %62 = vector.load %arg9[%c0_46, %c0_47] : memref<36x544xf32, #tpu.memory_space<vmem>>, vector<36x544xf32>
    %cst_48 = arith.constant dense<0.000000e+00> : vector<8x544xf32>
    %63 = tpu.matmul %61, %62, %cst_48 {dimension_numbers = #tpu.dot_dimension_numbers<[1], [0], [0], [1], [0, 0, 1, 1], [], []>} : vector<8x36xf32>, vector<36x544xf32>, vector<8x544xf32> -> vector<8x544xf32>
    %c0_49 = arith.constant 0 : index
    %64 = memref.load %arg4[%c0_49] : memref<1xf32, #tpu.memory_space<smem>>
    %65 = vector.extract_strided_slice %63 {offsets = [0, 0], sizes = [8, 256], strides = [1, 1]} : vector<8x544xf32> to vector<8x256xf32>
    %c0_50 = arith.constant 0 : index
    %c0_51 = arith.constant 0 : index
    %66 = vector.load %arg3[%c0_50, %c0_51] : memref<256x64xf32, #tpu.memory_space<vmem>>, vector<256x64xf32>
    %cst_52 = arith.constant dense<0.000000e+00> : vector<8x64xf32>
    %67 = tpu.matmul %65, %66, %cst_52 {dimension_numbers = #tpu.dot_dimension_numbers<[1], [0], [0], [1], [0, 0, 1, 1], [], []>} : vector<8x256xf32>, vector<256x64xf32>, vector<8x64xf32> -> vector<8x64xf32>
    %cst_53 = arith.constant 0.000000e+00 : f32
    %68 = vector.broadcast %cst_53 : f32 to vector<8x64xf32>
    %69 = arith.cmpf oge, %67, %68 : vector<8x64xf32>
    %70 = vector.broadcast %64 : f32 to vector<8x64xf32>
    %71 = arith.mulf %70, %67 : vector<8x64xf32>
    %72 = arith.select %69, %67, %71 : vector<8x64xi1>, vector<8x64xf32>
    %c0_54 = arith.constant 0 : index
    %c0_55 = arith.constant 0 : index
    %c0_56 = arith.constant 0 : index
    %73 = vector.load %arg7[%c0_54, %c0_55, %c0_56] : memref<1x8x128xf32, #tpu.memory_space<vmem>>, vector<1x8x64xf32>
    %74 = vector.shape_cast %73 : vector<1x8x64xf32> to vector<8x64xf32>
    %75 = vector.shape_cast %72 : vector<8x64xf32> to vector<1x8x64xf32>
    tpu.vector_store %arg7[%c0_54, %c0_55, %c0_56], %75 {strides = array<i32>} : memref<1x8x128xf32, #tpu.memory_space<vmem>>, vector<1x8x64xf32>,
    %76 = vector.extract_strided_slice %63 {offsets = [0, 272], sizes = [8, 256], strides = [1, 1]} : vector<8x544xf32> to vector<8x256xf32>
    %c0_57 = arith.constant 0 : index
    %c0_58 = arith.constant 0 : index
    %77 = vector.load %arg3[%c0_57, %c0_58] : memref<256x64xf32, #tpu.memory_space<vmem>>, vector<256x64xf32>
    %cst_59 = arith.constant dense<0.000000e+00> : vector<8x64xf32>
    %78 = tpu.matmul %76, %77, %cst_59 {dimension_numbers = #tpu.dot_dimension_numbers<[1], [0], [0], [1], [0, 0, 1, 1], [], []>} : vector<8x256xf32>, vector<256x64xf32>, vector<8x64xf32> -> vector<8x64xf32>
    %cst_60 = arith.constant 0.000000e+00 : f32
    %79 = vector.broadcast %cst_60 : f32 to vector<8x64xf32>
    %80 = arith.cmpf oge, %78, %79 : vector<8x64xf32>
    %81 = vector.broadcast %64 : f32 to vector<8x64xf32>
    %82 = arith.mulf %81, %78 : vector<8x64xf32>
    %83 = arith.select %80, %78, %82 : vector<8x64xi1>, vector<8x64xf32>
    %c0_61 = arith.constant 0 : index
    %c0_62 = arith.constant 0 : index
    %c64 = arith.constant 64 : index
    %84 = vector.load %arg7[%c0_61, %c0_62, %c64] : memref<1x8x128xf32, #tpu.memory_space<vmem>>, vector<1x8x64xf32>
    %85 = vector.shape_cast %84 : vector<1x8x64xf32> to vector<8x64xf32>
    %86 = vector.shape_cast %83 : vector<8x64xf32> to vector<1x8x64xf32>
    tpu.vector_store %arg7[%c0_61, %c0_62, %c64], %86 {strides = array<i32>} : memref<1x8x128xf32, #tpu.memory_space<vmem>>, vector<1x8x64xf32>,
    return
  }
  func.func @transform_0(%arg0: i32) -> (i32, i32, i32) {
    %c0_i32 = arith.constant 0 : i32
    %c0_i32_0 = arith.constant 0 : i32
    %c0_i32_1 = arith.constant 0 : i32
    return %arg0, %c0_i32, %c0_i32_0 : i32, i32, i32
  }
  func.func @transform_1(%arg0: i32) -> (i32, i32) {
    %c0_i32 = arith.constant 0 : i32
    %c0_i32_0 = arith.constant 0 : i32
    %c0_i32_1 = arith.constant 0 : i32
    return %c0_i32, %c0_i32_0 : i32, i32
  }
  func.func @transform_2(%arg0: i32) -> (i32, i32) {
    %c0_i32 = arith.constant 0 : i32
    %c0_i32_0 = arith.constant 0 : i32
    %c0_i32_1 = arith.constant 0 : i32
    return %c0_i32, %c0_i32_0 : i32, i32
  }
  func.func @transform_3(%arg0: i32) -> i32 {
    %c0_i32 = arith.constant 0 : i32
    %c0_i32_0 = arith.constant 0 : i32
    return %c0_i32 : i32
  }
  func.func @transform_4(%arg0: i32) -> (i32, i32) {
    %c0_i32 = arith.constant 0 : i32
    %c0_i32_0 = arith.constant 0 : i32
    %c0_i32_1 = arith.constant 0 : i32
    return %c0_i32, %c0_i32_0 : i32, i32
  }
  func.func @transform_5(%arg0: i32) -> (i32, i32) {
    %c0_i32 = arith.constant 0 : i32
    %c0_i32_0 = arith.constant 0 : i32
    %c0_i32_1 = arith.constant 0 : i32
    return %c0_i32, %c0_i32_0 : i32, i32
  }
  func.func @transform_6(%arg0: i32) -> (i32, i32, i32) {
    %c0_i32 = arith.constant 0 : i32
    %c0_i32_0 = arith.constant 0 : i32
    %c0_i32_1 = arith.constant 0 : i32
    return %arg0, %c0_i32, %c0_i32_0 : i32, i32, i32
  }
}

</mosaic_0001>

<llo_original>
// kernel: tpu_custom_call.1
$region0: #{tpu_custom_call.1}
  #allocation0 [shape = 'u32[]', space=smem, size = 0x4, offset = 0x4, fixed_abs, tag = 'smem constant byte address 0x4 - core index']
  #allocation1 [shape = 'u32[144,128]{1,0:T(1,128)}', space=vmem, size = 0x12000, scoped, tag = 'internal scratch']
  #allocation2 [shape = 'f32[4,578]{1,0:T(4,128)}', space=vmem, size = 0x2800, scoped, tag = 'scratch operand']
  #allocation3 [shape = 'f32[36,544]{1,0:T(8,128)}', space=vmem, size = 0x19000, scoped, tag = 'scratch operand']
  #allocation4 [shape = 'f32[1]{0:T(128)S(6)}', space=smem, size = 0x200, scoped, tag = 'scoped memory for tpu_custom_call.1']
  %s0 = inlined_call_operand.vmem [shape: f32[4,4,256], index: 0, kind: input, shape index: {}]
  %s1 = inlined_call_operand.vmem [shape: f32[8,36], index: 1, kind: input, shape index: {}]
  %s2 = inlined_call_operand.vmem [shape: f32[256,64], index: 2, kind: input, shape index: {}]
  %s3 = inlined_call_operand.<no memory space> [shape: f32[1], index: 3, kind: input, shape index: {}]
  %s4 = inlined_call_operand.vmem [shape: f32[8,1], index: 4, kind: input, shape index: {}]
  %s5 = inlined_call_operand.vmem [shape: f32[8,1], index: 5, kind: input, shape index: {}]
  %s6 = inlined_call_operand.hbm [shape: f32[2,8,128], index: 6, kind: output, shape index: {}]
  %s7 = sld [smem:[#allocation0]]
  $region57: #{tpu_custom_call.1} parent=0
    _
  %s9 = ssub.s32 1, %s7
  %s10 = scalar_select 0, %s9, %s7
  %11 = sst [smem:[#allocation4]] %s3
  $region1: #{tpu_custom_call.1} parent=0
    #allocation5 [shape = 'u8[8192]{0}', space=vmem, size = 0x2000, scoped, tag = 'output window, operand 0']
    #allocation6 [shape = 's32[2]{0}', space=sflag, size = 0x8, scoped, tag = 'scoped memory for tpu_custom_call.1']
    %12 = vsyncpa [#allocation6], 0
    %s13 = scalar_lea.sflag [#allocation6], 1
    %14 = vsyncpa %s13, 0
    loop: start=0, step=1, limit=4
    $region2: #{tpu_custom_call.1} parent=1 // loop_pre_header
      _
    $region3: #{tpu_custom_call.1} parent=1 // loop_header
      %s16 = sphi 0, %s20
      %p17 = scmp.ge.s32.totalorder %s16, 4
      %s26 = sphi 0, %s28
      %s29 = sphi 0, %s26
      %s30 = sphi 0, %s29
      %s46 = sphi 0, %s30
      %s50 = sphi 0, %s50
      %s52 = sphi 0, %s50
      %s53 = sphi 0, %s52
      %s67 = sphi 0, %s53
      %s71 = sphi 0, %s71
      %s73 = sphi 0, %s71
      %s74 = sphi 0, %s73
      %s88 = sphi 0, %s74
      %s92 = sphi 0, %s92
      %s94 = sphi 0, %s92
      %s95 = sphi 0, %s94
      %s109 = sphi 0, %s95
      %s113 = sphi 0, %s113
      %s115 = sphi 0, %s113
      %s116 = sphi 0, %s115
      %s130 = sphi 0, %s116
      %s134 = sphi 0, %s134
      %s136 = sphi 0, %s134
      %s137 = sphi 0, %s136
      %s151 = sphi 0, %s137
      %s157 = sphi 0, %s159
      %s160 = sphi 0, %s157
      %s161 = sphi 0, %s160
      %s177 = sphi 0, %s161
    $region4: #{tpu_custom_call.1} parent=1 // loop_header_branch
      %19 = sbr.rel (%p17) target = $region8
    $region5: #{tpu_custom_call.1} parent=1 // loop_body
      %s21 = ssub.s32 %s16, 1
      %s22 = ssub.s32 %s16, 2
      %s23 = sadd.s32 %s16, 1
      %s24 = ssub.s32 %s16, %s23
      %p25 = scmp.eq.s32.totalorder %s24, 0
      %s27 = sadd.s32 %s26, 1
      %s28 = scalar_select %p25, %s26, %s27
      %p31 = pneg %p25
      %p32 = scmp.eq.s32.totalorder %s16, 1
      %p33 = por %p31, %p32
      %p34 = scmp.ne.s32.totalorder %s26, %s29
      %p35 = scmp.eq.s32.totalorder %s16, 0
      %p36 = por %p34, %p35
      %p37 = scmp.ne.s32.totalorder %s26, %s29
      %p38 = scmp.eq.s32.totalorder %s21, 1
      %p39 = por %p37, %p38
      %p40 = scmp.ne.s32.totalorder %s29, %s30
      %p41 = scmp.eq.s32.totalorder %s21, 0
      %p42 = por %p40, %p41
      %p43 = scmp.ne.s32.totalorder %s29, %s30
      %p44 = scmp.eq.s32.totalorder %s22, 1
      %p45 = por %p43, %p44
      %p47 = scmp.ne.s32.totalorder %s30, %s46
      %p48 = scmp.eq.s32.totalorder %s22, 0
      %p49 = por %p47, %p48
      %s51 = sadd.s32 %s50, 1
      %p54 = scmp.eq.s32.totalorder %s16, 1
      %p55 = scmp.ne.s32.totalorder %s50, %s52
      %p56 = scmp.eq.s32.totalorder %s16, 0
      %p57 = por %p55, %p56
      %p58 = scmp.ne.s32.totalorder %s50, %s52
      %p59 = scmp.eq.s32.totalorder %s21, 1
      %p60 = por %p58, %p59
      %p61 = scmp.ne.s32.totalorder %s52, %s53
      %p62 = scmp.eq.s32.totalorder %s21, 0
      %p63 = por %p61, %p62
      %p64 = scmp.ne.s32.totalorder %s52, %s53
      %p65 = scmp.eq.s32.totalorder %s22, 1
      %p66 = por %p64, %p65
      %p68 = scmp.ne.s32.totalorder %s53, %s67
      %p69 = scmp.eq.s32.totalorder %s22, 0
      %p70 = por %p68, %p69
      %s72 = sadd.s32 %s71, 1
      %p75 = scmp.eq.s32.totalorder %s16, 1
      %p76 = scmp.ne.s32.totalorder %s71, %s73
      %p77 = scmp.eq.s32.totalorder %s16, 0
      %p78 = por %p76, %p77
      %p79 = scmp.ne.s32.totalorder %s71, %s73
      %p80 = scmp.eq.s32.totalorder %s21, 1
      %p81 = por %p79, %p80
      %p82 = scmp.ne.s32.totalorder %s73, %s74
      %p83 = scmp.eq.s32.totalorder %s21, 0
      %p84 = por %p82, %p83
      %p85 = scmp.ne.s32.totalorder %s73, %s74
      %p86 = scmp.eq.s32.totalorder %s22, 1
      %p87 = por %p85, %p86
      %p89 = scmp.ne.s32.totalorder %s74, %s88
      %p90 = scmp.eq.s32.totalorder %s22, 0
      %p91 = por %p89, %p90
      %s93 = sadd.s32 %s92, 1
      %p96 = scmp.eq.s32.totalorder %s16, 1
      %p97 = scmp.ne.s32.totalorder %s92, %s94
      %p98 = scmp.eq.s32.totalorder %s16, 0
      %p99 = por %p97, %p98
      %p100 = scmp.ne.s32.totalorder %s92, %s94
      %p101 = scmp.eq.s32.totalorder %s21, 1
      %p102 = por %p100, %p101
      %p103 = scmp.ne.s32.totalorder %s94, %s95
      %p104 = scmp.eq.s32.totalorder %s21, 0
      %p105 = por %p103, %p104
      %p106 = scmp.ne.s32.totalorder %s94, %s95
      %p107 = scmp.eq.s32.totalorder %s22, 1
      %p108 = por %p106, %p107
      %p110 = scmp.ne.s32.totalorder %s95, %s109
      %p111 = scmp.eq.s32.totalorder %s22, 0
      %p112 = por %p110, %p111
      %s114 = sadd.s32 %s113, 1
      %p117 = scmp.eq.s32.totalorder %s16, 1
      %p118 = scmp.ne.s32.totalorder %s113, %s115
      %p119 = scmp.eq.s32.totalorder %s16, 0
      %p120 = por %p118, %p119
      %p121 = scmp.ne.s32.totalorder %s113, %s115
      %p122 = scmp.eq.s32.totalorder %s21, 1
      %p123 = por %p121, %p122
      %p124 = scmp.ne.s32.totalorder %s115, %s116
      %p125 = scmp.eq.s32.totalorder %s21, 0
      %p126 = por %p124, %p125
      %p127 = scmp.ne.s32.totalorder %s115, %s116
      %p128 = scmp.eq.s32.totalorder %s22, 1
      %p129 = por %p127, %p128
      %p131 = scmp.ne.s32.totalorder %s116, %s130
      %p132 = scmp.eq.s32.totalorder %s22, 0
      %p133 = por %p131, %p132
      %s135 = sadd.s32 %s134, 1
      %p138 = scmp.eq.s32.totalorder %s16, 1
      %p139 = scmp.ne.s32.totalorder %s134, %s136
      %p140 = scmp.eq.s32.totalorder %s16, 0
      %p141 = por %p139, %p140
      %p142 = scmp.ne.s32.totalorder %s134, %s136
      %p143 = scmp.eq.s32.totalorder %s21, 1
      %p144 = por %p142, %p143
      %p145 = scmp.ne.s32.totalorder %s136, %s137
      %p146 = scmp.eq.s32.totalorder %s21, 0
      %p147 = por %p145, %p146
      %p148 = scmp.ne.s32.totalorder %s136, %s137
      %p149 = scmp.eq.s32.totalorder %s22, 1
      %p150 = por %p148, %p149
      %p152 = scmp.ne.s32.totalorder %s137, %s151
      %p153 = scmp.eq.s32.totalorder %s22, 0
      %p154 = por %p152, %p153
      %s155 = ssub.s32 %s16, %s23
      %p156 = scmp.eq.s32.totalorder %s155, 0
      %s158 = sadd.s32 %s157, 1
      %s159 = scalar_select %p156, %s157, %s158
      %p162 = pneg %p156
      %p163 = scmp.eq.s32.totalorder %s16, 1
      %p164 = por %p162, %p163
      %p165 = scmp.ne.s32.totalorder %s157, %s160
      %p166 = scmp.eq.s32.totalorder %s16, 0
      %p167 = por %p165, %p166
      %p168 = scmp.ne.s32.totalorder %s157, %s160
      %p169 = scmp.eq.s32.totalorder %s21, 1
      %p170 = por %p168, %p169
      %p171 = scmp.ne.s32.totalorder %s160, %s161
      %p172 = scmp.eq.s32.totalorder %s21, 0
      %p173 = por %p171, %p172
      %p174 = scmp.ne.s32.totalorder %s160, %s161
      %p175 = scmp.eq.s32.totalorder %s22, 1
      %p176 = por %p174, %p175
      %p178 = scmp.ne.s32.totalorder %s161, %s177
      %p179 = scmp.eq.s32.totalorder %s22, 0
      %p180 = por %p178, %p179
      %p181 = scmp.le.s32.totalorder 1, %s16
      %p182 = scmp.lt.s32.totalorder %s16, 3
      %p183 = pnand %p181, %p182
      %p184 = pneg %p183
      // Predicated region
      $region9: #{tpu_custom_call.1} parent=5 // pred_check
        _
      $region10: #{tpu_custom_call.1} parent=5 // pred_check_branch
        %186 = sbr.rel (%p183) target = $region12
      $region11: #{tpu_custom_call.1} parent=5 // pred_region
        %s187 = ssub.s32 %s16, 1
        // Predicated region
        $region13: #{tpu_custom_call.1} parent=11 // pred_check
          %p188 = pneg %p63
        $region14: #{tpu_custom_call.1} parent=11 // pred_check_branch
          %190 = sbr.rel (%p188) target = $region16
        $region15: #{tpu_custom_call.1} parent=11 // pred_region
          _
        $region16: #{tpu_custom_call.1} parent=11 // pred_fallthru
          _
        // Predicated region
        $region17: #{tpu_custom_call.1} parent=11 // pred_check
          %p191 = pneg %p84
        $region18: #{tpu_custom_call.1} parent=11 // pred_check_branch
          %193 = sbr.rel (%p191) target = $region20
        $region19: #{tpu_custom_call.1} parent=11 // pred_region
          _
        $region20: #{tpu_custom_call.1} parent=11 // pred_fallthru
          _
        // Predicated region
        $region21: #{tpu_custom_call.1} parent=11 // pred_check
          %p194 = pneg %p105
        $region22: #{tpu_custom_call.1} parent=11 // pred_check_branch
          %196 = sbr.rel (%p194) target = $region24
        $region23: #{tpu_custom_call.1} parent=11 // pred_region
          _
        $region24: #{tpu_custom_call.1} parent=11 // pred_fallthru
          _
        // Predicated region
        $region25: #{tpu_custom_call.1} parent=11 // pred_check
          %p197 = pneg %p126
        $region26: #{tpu_custom_call.1} parent=11 // pred_check_branch
          %199 = sbr.rel (%p197) target = $region28
        $region27: #{tpu_custom_call.1} parent=11 // pred_region
          _
        $region28: #{tpu_custom_call.1} parent=11 // pred_fallthru
          _
        // Predicated region
        $region29: #{tpu_custom_call.1} parent=11 // pred_check
          %p200 = pneg %p147
        $region30: #{tpu_custom_call.1} parent=11 // pred_check_branch
          %202 = sbr.rel (%p200) target = $region32
        $region31: #{tpu_custom_call.1} parent=11 // pred_region
          _
        $region32: #{tpu_custom_call.1} parent=11 // pred_fallthru
          _
      $region12: #{tpu_custom_call.1} parent=5 // pred_fallthru
        _
      %p203 = scmp.lt.s32.totalorder %s16, 2
      // Predicated region
      $region33: #{tpu_custom_call.1} parent=5 // pred_check
        %p204 = pneg %p203
      $region34: #{tpu_custom_call.1} parent=5 // pred_check_branch
        %206 = sbr.rel (%p204) target = $region36
      $region35: #{tpu_custom_call.1} parent=5 // pred_region
        // Predicated region
        $region37: #{tpu_custom_call.1} parent=35 // pred_check
          %p207 = pneg %p36
        $region38: #{tpu_custom_call.1} parent=35 // pred_check_branch
          %209 = sbr.rel (%p207) target = $region40
        $region39: #{tpu_custom_call.1} parent=35 // pred_region
          %s210 = smul.u32 2, %s16
          %p211 = scmp.lt.s32.totalorder %s210, 3
          %s212 = scalar_select %p211, %s210, 3
          %s213 = smul.addr %s212, 2
          %s214 = smul.addr %s213, 4
          %s215 = scalar_lea.vmem %s0, %s214
          %s216 = smul.u32 2, %s16
        $region40: #{tpu_custom_call.1} parent=35 // pred_fallthru
          _
      $region36: #{tpu_custom_call.1} parent=5 // pred_fallthru
        _
      %p217 = scmp.le.s32.totalorder 1, %s16
      %p218 = scmp.lt.s32.totalorder %s16, 3
      %p219 = pnand %p217, %p218
      %p220 = pneg %p219
      // Predicated region
      $region41: #{tpu_custom_call.1} parent=5 // pred_check
        _
      $region42: #{tpu_custom_call.1} parent=5 // pred_check_branch
        %222 = sbr.rel (%p219) target = $region44
      $region43: #{tpu_custom_call.1} parent=5 // pred_region
        %s223 = ssub.s32 %s16, 1
        %s224 = smul.u32 2, %s21
        %p225 = scmp.lt.s32.totalorder %s224, 3
        %s226 = scalar_select %p225, %s224, 3
        %s227 = smul.addr %s226, 2
        %s228 = smul.addr %s227, 4
        %s229 = scalar_lea.vmem %s0, %s228
        %p230 = pneg %p42
        %p231 = pneg %p39
        %p232 = pneg %p63
        %p233 = pneg %p60
        %p234 = pneg %p84
        %p235 = pneg %p81
        %p236 = pneg %p105
        %p237 = pneg %p102
        %p238 = pneg %p126
        %p239 = pneg %p123
        %p240 = pneg %p147
        %p241 = pneg %p144
        %p242 = pneg %p173
        %p243 = pneg %p170
        %s244 = sand.u32 %s160, 1
        %s245 = scalar_lea.sflag [#allocation6], %s244
        %s246 = sand.u32 %s160, 1
        %s247 = smul.addr %s246, 8
        %s248 = scalar_lea.vmem [#allocation5], %s247
        %s249 = smul.u32 2, %s21
        %p250 = scmp.lt.s32.totalorder %s249, 3
        %s251 = scalar_select %p250, %s249, 3
        %s252 = smul.addr %s251, 2
        %s253 = smul.addr %s252, 4
        %s254 = scalar_lea.vmem %s0, %s253
        %s255 = smul.u32 2, %s21
        %vm256 = vcmask 134152
        %257 = vst.msk [vmem:[#allocation2] sm:$0xf] %vm256, 0.0
        %vm258 = vcmask 265352
        %259 = vst.msk [vmem:[#allocation2 + $0x8] sm:$0xf] %vm258, 0.0
        %vm260 = vcmask 396552
        %261 = vst.msk [vmem:[#allocation2 + $0x10] sm:$0xf] %vm260, 0.0
        %v262 = vld [vmem:[%s254] sm:$0xff]
        %264 = vrot.lane.b32.xlu0 %v262, 17
        %v265 = vpop.permute.xlu0 %264
        %v266 = vrot.slane %v265, 4
        %vm267 = vcmask 138240
        %v268 = vsel %vm267, %v266, %v265
        %vm271 = vcmask 1043592
        %vm272 = vcmask 1047556
        %vm273 = vmor %vm272, %vm271
        %274 = vst.msk [vmem:[#allocation2] sm:$0xff] %vm273, %v268
        %vm275 = vcmask 134144
        %276 = vst.msk [vmem:[#allocation2 + $0x8] sm:$0xf] %vm275, %v266
        %s277 = scalar_lea.vmem %s254, 8
        %v278 = vld [vmem:[%s277] sm:$0xff]
        %280 = vrot.lane.b32.xlu0 %v278, 33
        %v281 = vpop.permute.xlu0 %280
        %v282 = vrot.slane %v281, 4
        %vm283 = vcmask 269312
        %v284 = vsel %vm283, %v282, %v281
        %vm287 = vcmask 1043720
        %vm288 = vmor %vm272, %vm287
        %289 = vst.msk [vmem:[#allocation2 + $0x8] sm:$0xff] %vm288, %v284
        %vm290 = vcmask 265216
        %291 = vst.msk [vmem:[#allocation2 + $0x10] sm:$0xf] %vm290, %v282
        %v292 = vlaneseq
        %v293 = vand.u32 %v292, 127
        %v294 = vadd.s32 %v293, 128
        %v295 = vadd.s32 %v293, 256
        %v296 = vadd.s32 %v293, 384
        %v297 = vadd.s32 %v293, 512
        %vm298 = vcmp.lt.s32.totalorder %v293, 0
        %v299 = vsub.s32 0, %v293
        %v300 = vsel %vm298, %v299, %v293
        %v301 = vshrl.u32 %v300, 4
        %v302 = vand.u32 %v300, 15
        %v303 = vsub.s32 0, %v302
        %v304 = vsel %vm298, %v303, %v302
        %vm305 = vcmp.lt.s32.totalorder %v294, 0
        %v306 = vsub.s32 0, %v294
        %v307 = vsel %vm305, %v306, %v294
        %v308 = vshrl.u32 %v307, 4
        %v309 = vand.u32 %v307, 15
        %v310 = vsub.s32 0, %v309
        %v311 = vsel %vm305, %v310, %v309
        %vm312 = vcmp.lt.s32.totalorder %v295, 0
        %v313 = vsub.s32 0, %v295
        %v314 = vsel %vm312, %v313, %v295
        %v315 = vshrl.u32 %v314, 4
        %v316 = vand.u32 %v314, 15
        %v317 = vsub.s32 0, %v316
        %v318 = vsel %vm312, %v317, %v316
        %vm319 = vcmp.lt.s32.totalorder %v296, 0
        %v320 = vsub.s32 0, %v296
        %v321 = vsel %vm319, %v320, %v296
        %v322 = vshrl.u32 %v321, 4
        %v323 = vand.u32 %v321, 15
        %v324 = vsub.s32 0, %v323
        %v325 = vsel %vm319, %v324, %v323
        %vm326 = vcmp.lt.s32.totalorder %v297, 0
        %v327 = vsub.s32 0, %v297
        %v328 = vsel %vm326, %v327, %v297
        %v329 = vshrl.u32 %v328, 4
        %v330 = vand.u32 %v328, 15
        %v331 = vsub.s32 0, %v330
        %v332 = vsel %vm326, %v331, %v330
        %vm333 = vcmp.ne.s32.totalorder %v304, 0
        %vm334 = vcmp.ne.s32.totalorder %v311, 0
        %vm335 = vcmp.ne.s32.totalorder %v318, 0
        %vm336 = vcmp.ne.s32.totalorder %v325, 0
        %vm337 = vcmp.ne.s32.totalorder %v332, 0
        %vm338 = vcmp.lt.s32.totalorder %v304, 0
        %vm339 = vcmp.lt.s32.totalorder %v311, 0
        %vm340 = vcmp.lt.s32.totalorder %v318, 0
        %vm341 = vcmp.lt.s32.totalorder %v325, 0
        %vm342 = vcmp.lt.s32.totalorder %v332, 0
        %vm343 = vmand %vm338, %vm333
        %vm344 = vmand %vm339, %vm334
        %vm345 = vmand %vm340, %vm335
        %vm346 = vmand %vm341, %vm336
        %vm347 = vmand %vm342, %vm337
        %v348 = vadd.s32 %v304, 16
        %v349 = vadd.s32 %v311, 16
        %v350 = vadd.s32 %v318, 16
        %v351 = vadd.s32 %v325, 16
        %v352 = vadd.s32 %v332, 16
        %v353 = vsel %vm343, %v348, %v304
        %v354 = vsel %vm344, %v349, %v311
        %v355 = vsel %vm345, %v350, %v318
        %v356 = vsel %vm346, %v351, %v325
        %v357 = vsel %vm347, %v352, %v332
        %vm358 = vcmp.ne.s32.totalorder %v353, 0
        %vm359 = vcmp.ne.s32.totalorder %v354, 0
        %vm360 = vcmp.ne.s32.totalorder %v355, 0
        %vm361 = vcmp.ne.s32.totalorder %v356, 0
        %vm362 = vcmp.ne.s32.totalorder %v357, 0
        %vm363 = vcmp.ne.s32.totalorder %v353, 15
        %vm364 = vcmp.ne.s32.totalorder %v354, 15
        %vm365 = vcmp.ne.s32.totalorder %v355, 15
        %vm366 = vcmp.ne.s32.totalorder %v356, 15
        %vm367 = vcmp.ne.s32.totalorder %v357, 15
        %v368 = vld [vmem:[#allocation2] sm:$0xff]
        %v369 = vld [vmem:[#allocation2 + $0x8] sm:$0xff]
        %v370 = vld [vmem:[#allocation2 + $0x10] sm:$0xf]
        %v373 = vcombine.high %v368, %v368
        %v374 = vcombine.high %v369, %v369
        %v377 = vsel %vm358, %v368, 0.0
        %v378 = vsel %vm359, %v373, 0.0
        %v379 = vsel %vm360, %v369, 0.0
        %v380 = vsel %vm361, %v374, 0.0
        %v381 = vsel %vm362, %v370, 0.0
        %382 = vst [vmem:[#allocation3] sm:$0xf] %v377
        %383 = vst [vmem:[#allocation3 + $0x8] sm:$0xf] %v378
        %384 = vst [vmem:[#allocation3 + $0x10] sm:$0xf] %v379
        %385 = vst [vmem:[#allocation3 + $0x18] sm:$0xf] %v380
        %vm386 = vcmask 257024
        %387 = vst.msk [vmem:[#allocation3 + $0x20] sm:$0xf] %vm386, %v381
        %v388 = vld [vmem:[#allocation2] sm:$0xff]
        %v389 = vld [vmem:[#allocation2 + $0x8] sm:$0xff]
        %v390 = vld [vmem:[#allocation2 + $0x10] sm:$0xf]
        %v394 = vcombine.low %v388, %v388
        %v395 = vcombine.low %v389, %v389
        %v396 = vcombine.low %v390, %v390
        %397 = vrot.lane.b32.xlu0 %v394, 127
        %v398 = vpop.permute.xlu0 %397
        %399 = vrot.lane.b32.xlu0 %v388, 127
        %v400 = vpop.permute.xlu0 %399
        %401 = vrot.lane.b32.xlu0 %v395, 127
        %v402 = vpop.permute.xlu0 %401
        %403 = vrot.lane.b32.xlu0 %v389, 127
        %v404 = vpop.permute.xlu0 %403
        %405 = vrot.lane.b32.xlu0 %v396, 127
        %v406 = vpop.permute.xlu0 %405
        %vm407 = vcmask 1039360
        %v408 = vsel %vm407, %v398, %v400
        %v409 = vsel %vm407, %v400, %v402
        %v410 = vsel %vm407, %v402, %v404
        %v411 = vsel %vm407, %v404, %v406
        %417 = vst [vmem:[#allocation3] sm:$0xf0] %v408
        %418 = vst [vmem:[#allocation3 + $0x8] sm:$0xf0] %v409
        %419 = vst [vmem:[#allocation3 + $0x10] sm:$0xf0] %v410
        %420 = vst [vmem:[#allocation3 + $0x18] sm:$0xf0] %v411
        %vm421 = vcmask 261124
        %422 = vst.msk [vmem:[#allocation3 + $0x20] sm:$0xf0] %vm421, %v406
        %v423 = vld [vmem:[#allocation2] sm:$0xff]
        %v424 = vld [vmem:[#allocation2 + $0x8] sm:$0xff]
        %v425 = vld [vmem:[#allocation2 + $0x10] sm:$0xf]
        %v429 = vcombine.high %v423, %v423
        %v430 = vcombine.high %v424, %v424
        %431 = vrot.lane.b32.xlu0 %v423, 126
        %v432 = vpop.permute.xlu0 %431
        %433 = vrot.lane.b32.xlu0 %v429, 126
        %v434 = vpop.permute.xlu0 %433
        %435 = vrot.lane.b32.xlu0 %v424, 126
        %v436 = vpop.permute.xlu0 %435
        %437 = vrot.lane.b32.xlu0 %v430, 126
        %v438 = vpop.permute.xlu0 %437
        %439 = vrot.lane.b32.xlu0 %v425, 126
        %v440 = vpop.permute.xlu0 %439
        %vm441 = vcmask 1031168
        %v442 = vsel %vm441, %v432, %v434
        %v443 = vsel %vm441, %v434, %v436
        %v444 = vsel %vm441, %v436, %v438
        %v445 = vsel %vm441, %v438, %v440
        %v451 = vsel %vm363, %v442, 0.0
        %v452 = vsel %vm364, %v443, 0.0
        %v453 = vsel %vm365, %v444, 0.0
        %v454 = vsel %vm366, %v445, 0.0
        %v455 = vsel %vm367, %v440, 0.0
        %456 = vst [vmem:[#allocation3 + $0x28] sm:$0xf] %v451
        %457 = vst [vmem:[#allocation3 + $0x30] sm:$0xf] %v452
        %458 = vst [vmem:[#allocation3 + $0x38] sm:$0xf] %v453
        %459 = vst [vmem:[#allocation3 + $0x40] sm:$0xf] %v454
        %460 = vst.msk [vmem:[#allocation3 + $0x48] sm:$0xf] %vm386, %v455
        %v461 = vld [vmem:[#allocation2] sm:$0xff]
        %v462 = vld [vmem:[#allocation2 + $0x8] sm:$0xff]
        %v463 = vld [vmem:[#allocation2 + $0x10] sm:$0xf]
        %v467 = vcombine.high %v461, %v461
        %v468 = vcombine.high %v462, %v462
        %469 = vrot.lane.b32.xlu0 %v461, 112
        %v470 = vpop.permute.xlu0 %469
        %471 = vrot.lane.b32.xlu0 %v467, 112
        %v472 = vpop.permute.xlu0 %471
        %473 = vrot.lane.b32.xlu0 %v462, 112
        %v474 = vpop.permute.xlu0 %473
        %475 = vrot.lane.b32.xlu0 %v468, 112
        %v476 = vpop.permute.xlu0 %475
        %477 = vrot.lane.b32.xlu0 %v463, 112
        %v478 = vpop.permute.xlu0 %477
        %vm479 = vcmask 916480
        %v480 = vsel %vm479, %v470, %v472
        %v481 = vsel %vm479, %v472, %v474
        %v482 = vsel %vm479, %v474, %v476
        %v483 = vsel %vm479, %v476, %v478
        %v489 = vsel %vm358, %v480, 0.0
        %v490 = vsel %vm359, %v481, 0.0
        %v491 = vsel %vm360, %v482, 0.0
        %v492 = vsel %vm361, %v483, 0.0
        %v493 = vsel %vm362, %v478, 0.0
        %v499 = vrot.slane %v489, 4
        %v500 = vrot.slane %v490, 4
        %v501 = vrot.slane %v491, 4
        %v502 = vrot.slane %v492, 4
        %v503 = vrot.slane %v493, 4
        %509 = vst [vmem:[#allocation3 + $0x28] sm:$0xf0] %v499
        %510 = vst [vmem:[#allocation3 + $0x30] sm:$0xf0] %v500
        %511 = vst [vmem:[#allocation3 + $0x38] sm:$0xf0] %v501
        %512 = vst [vmem:[#allocation3 + $0x40] sm:$0xf0] %v502
        %513 = vst.msk [vmem:[#allocation3 + $0x48] sm:$0xf0] %vm421, %v503
        %v514 = vld [vmem:[#allocation2] sm:$0xff]
        %v515 = vld [vmem:[#allocation2 + $0x8] sm:$0xff]
        %v516 = vld [vmem:[#allocation2 + $0x10] sm:$0xf]
        %v520 = vcombine.high %v514, %v514
        %v521 = vcombine.high %v515, %v515
        %522 = vrot.lane.b32.xlu0 %v514, 111
        %v523 = vpop.permute.xlu0 %522
        %524 = vrot.lane.b32.xlu0 %v520, 111
        %v525 = vpop.permute.xlu0 %524
        %526 = vrot.lane.b32.xlu0 %v515, 111
        %v527 = vpop.permute.xlu0 %526
        %528 = vrot.lane.b32.xlu0 %v521, 111
        %v529 = vpop.permute.xlu0 %528
        %530 = vrot.lane.b32.xlu0 %v516, 111
        %v531 = vpop.permute.xlu0 %530
        %vm532 = vcmask 908288
        %v533 = vsel %vm532, %v523, %v525
        %v534 = vsel %vm532, %v525, %v527
        %v535 = vsel %vm532, %v527, %v529
        %v536 = vsel %vm532, %v529, %v531
        %542 = vst [vmem:[#allocation3 + $0x50] sm:$0xf] %v533
        %543 = vst [vmem:[#allocation3 + $0x58] sm:$0xf] %v534
        %544 = vst [vmem:[#allocation3 + $0x60] sm:$0xf] %v535
        %545 = vst [vmem:[#allocation3 + $0x68] sm:$0xf] %v536
        %546 = vst.msk [vmem:[#allocation3 + $0x70] sm:$0xf] %vm386, %v531
        %v547 = vld [vmem:[#allocation2] sm:$0xff]
        %v548 = vld [vmem:[#allocation2 + $0x8] sm:$0xff]
        %v549 = vld [vmem:[#allocation2 + $0x10] sm:$0xf]
        %v553 = vcombine.high %v547, %v547
        %v554 = vcombine.high %v548, %v548
        %555 = vrot.lane.b32.xlu0 %v547, 110
        %v556 = vpop.permute.xlu0 %555
        %557 = vrot.lane.b32.xlu0 %v553, 110
        %v558 = vpop.permute.xlu0 %557
        %559 = vrot.lane.b32.xlu0 %v548, 110
        %v560 = vpop.permute.xlu0 %559
        %561 = vrot.lane.b32.xlu0 %v554, 110
        %v562 = vpop.permute.xlu0 %561
        %563 = vrot.lane.b32.xlu0 %v549, 110
        %v564 = vpop.permute.xlu0 %563
        %vm565 = vcmask 900096
        %v566 = vsel %vm565, %v556, %v558
        %v567 = vsel %vm565, %v558, %v560
        %v568 = vsel %vm565, %v560, %v562
        %v569 = vsel %vm565, %v562, %v564
        %v575 = vsel %vm363, %v566, 0.0
        %v576 = vsel %vm364, %v567, 0.0
        %v577 = vsel %vm365, %v568, 0.0
        %v578 = vsel %vm366, %v569, 0.0
        %v579 = vsel %vm367, %v564, 0.0
        %v585 = vrot.slane %v575, 4
        %v586 = vrot.slane %v576, 4
        %v587 = vrot.slane %v577, 4
        %v588 = vrot.slane %v578, 4
        %v589 = vrot.slane %v579, 4
        %595 = vst [vmem:[#allocation3 + $0x50] sm:$0xf0] %v585
        %596 = vst [vmem:[#allocation3 + $0x58] sm:$0xf0] %v586
        %597 = vst [vmem:[#allocation3 + $0x60] sm:$0xf0] %v587
        %598 = vst [vmem:[#allocation3 + $0x68] sm:$0xf0] %v588
        %599 = vst.msk [vmem:[#allocation3 + $0x70] sm:$0xf0] %vm421, %v589
        %v600 = vld [vmem:[#allocation2] sm:$0xff]
        %v601 = vld [vmem:[#allocation2 + $0x8] sm:$0xff]
        %v602 = vld [vmem:[#allocation2 + $0x10] sm:$0xf]
        %v606 = vcombine.high %v600, %v600
        %v607 = vcombine.high %v601, %v601
        %608 = vrot.lane.b32.xlu0 %v600, 96
        %v609 = vpop.permute.xlu0 %608
        %610 = vrot.lane.b32.xlu0 %v606, 96
        %v611 = vpop.permute.xlu0 %610
        %612 = vrot.lane.b32.xlu0 %v601, 96
        %v613 = vpop.permute.xlu0 %612
        %614 = vrot.lane.b32.xlu0 %v607, 96
        %v615 = vpop.permute.xlu0 %614
        %616 = vrot.lane.b32.xlu0 %v602, 96
        %v617 = vpop.permute.xlu0 %616
        %vm618 = vcmask 785408
        %v619 = vsel %vm618, %v609, %v611
        %v620 = vsel %vm618, %v611, %v613
        %v621 = vsel %vm618, %v613, %v615
        %v622 = vsel %vm618, %v615, %v617
        %v628 = vsel %vm358, %v619, 0.0
        %v629 = vsel %vm359, %v620, 0.0
        %v630 = vsel %vm360, %v621, 0.0
        %v631 = vsel %vm361, %v622, 0.0
        %v632 = vsel %vm362, %v617, 0.0
        %633 = vst [vmem:[#allocation3 + $0x78] sm:$0xf] %v628
        %634 = vst [vmem:[#allocation3 + $0x80] sm:$0xf] %v629
        %635 = vst [vmem:[#allocation3 + $0x88] sm:$0xf] %v630
        %636 = vst [vmem:[#allocation3 + $0x90] sm:$0xf] %v631
        %637 = vst.msk [vmem:[#allocation3 + $0x98] sm:$0xf] %vm386, %v632
        %v638 = vld [vmem:[#allocation2] sm:$0xff]
        %v639 = vld [vmem:[#allocation2 + $0x8] sm:$0xff]
        %v640 = vld [vmem:[#allocation2 + $0x10] sm:$0xf]
        %v644 = vcombine.low %v638, %v638
        %v645 = vcombine.low %v639, %v639
        %v646 = vcombine.low %v640, %v640
        %647 = vrot.lane.b32.xlu0 %v644, 95
        %v648 = vpop.permute.xlu0 %647
        %649 = vrot.lane.b32.xlu0 %v638, 95
        %v650 = vpop.permute.xlu0 %649
        %651 = vrot.lane.b32.xlu0 %v645, 95
        %v652 = vpop.permute.xlu0 %651
        %653 = vrot.lane.b32.xlu0 %v639, 95
        %v654 = vpop.permute.xlu0 %653
        %655 = vrot.lane.b32.xlu0 %v646, 95
        %v656 = vpop.permute.xlu0 %655
        %vm657 = vcmask 777216
        %v658 = vsel %vm657, %v648, %v650
        %v659 = vsel %vm657, %v650, %v652
        %v660 = vsel %vm657, %v652, %v654
        %v661 = vsel %vm657, %v654, %v656
        %667 = vst [vmem:[#allocation3 + $0x78] sm:$0xf0] %v658
        %668 = vst [vmem:[#allocation3 + $0x80] sm:$0xf0] %v659
        %669 = vst [vmem:[#allocation3 + $0x88] sm:$0xf0] %v660
        %670 = vst [vmem:[#allocation3 + $0x90] sm:$0xf0] %v661
        %671 = vst.msk [vmem:[#allocation3 + $0x98] sm:$0xf0] %vm421, %v656
        %v672 = vld [vmem:[#allocation2] sm:$0xff]
        %v673 = vld [vmem:[#allocation2 + $0x8] sm:$0xff]
        %v674 = vld [vmem:[#allocation2 + $0x10] sm:$0xf]
        %v678 = vcombine.high %v672, %v672
        %v679 = vcombine.high %v673, %v673
        %680 = vrot.lane.b32.xlu0 %v672, 94
        %v681 = vpop.permute.xlu0 %680
        %682 = vrot.lane.b32.xlu0 %v678, 94
        %v683 = vpop.permute.xlu0 %682
        %684 = vrot.lane.b32.xlu0 %v673, 94
        %v685 = vpop.permute.xlu0 %684
        %686 = vrot.lane.b32.xlu0 %v679, 94
        %v687 = vpop.permute.xlu0 %686
        %688 = vrot.lane.b32.xlu0 %v674, 94
        %v689 = vpop.permute.xlu0 %688
        %vm690 = vcmask 769024
        %v691 = vsel %vm690, %v681, %v683
        %v692 = vsel %vm690, %v683, %v685
        %v693 = vsel %vm690, %v685, %v687
        %v694 = vsel %vm690, %v687, %v689
        %v700 = vsel %vm363, %v691, 0.0
        %v701 = vsel %vm364, %v692, 0.0
        %v702 = vsel %vm365, %v693, 0.0
        %v703 = vsel %vm366, %v694, 0.0
        %v704 = vsel %vm367, %v689, 0.0
        %705 = vst [vmem:[#allocation3 + $0xa0] sm:$0xf] %v700
        %706 = vst [vmem:[#allocation3 + $0xa8] sm:$0xf] %v701
        %707 = vst [vmem:[#allocation3 + $0xb0] sm:$0xf] %v702
        %708 = vst [vmem:[#allocation3 + $0xb8] sm:$0xf] %v703
        %709 = vst.msk [vmem:[#allocation3 + $0xc0] sm:$0xf] %vm386, %v704
        %v710 = vld [vmem:[%s1] sm:$0xff]
        %v711 = vld [vmem:[#allocation3] sm:$0xff]
        %v712 = vld [vmem:[#allocation3 + $0x8] sm:$0xff]
        %v713 = vld [vmem:[#allocation3 + $0x10] sm:$0xff]
        %v714 = vld [vmem:[#allocation3 + $0x18] sm:$0xff]
        %v715 = vld [vmem:[#allocation3 + $0x20] sm:$0xff]
        %v716 = vld [vmem:[#allocation3 + $0x28] sm:$0xff]
        %v717 = vld [vmem:[#allocation3 + $0x30] sm:$0xff]
        %v718 = vld [vmem:[#allocation3 + $0x38] sm:$0xff]
        %v719 = vld [vmem:[#allocation3 + $0x40] sm:$0xff]
        %v720 = vld [vmem:[#allocation3 + $0x48] sm:$0xff]
        %v721 = vld [vmem:[#allocation3 + $0x50] sm:$0xff]
        %v722 = vld [vmem:[#allocation3 + $0x58] sm:$0xff]
        %v723 = vld [vmem:[#allocation3 + $0x60] sm:$0xff]
        %v724 = vld [vmem:[#allocation3 + $0x68] sm:$0xff]
        %v725 = vld [vmem:[#allocation3 + $0x70] sm:$0xff]
        %v726 = vld [vmem:[#allocation3 + $0x78] sm:$0xff]
        %v727 = vld [vmem:[#allocation3 + $0x80] sm:$0xff]
        %v728 = vld [vmem:[#allocation3 + $0x88] sm:$0xff]
        %v729 = vld [vmem:[#allocation3 + $0x90] sm:$0xff]
        %v730 = vld [vmem:[#allocation3 + $0x98] sm:$0xff]
        %v731 = vld [vmem:[#allocation3 + $0xa0] sm:$0xf]
        %v732 = vld [vmem:[#allocation3 + $0xa8] sm:$0xf]
        %v733 = vld [vmem:[#allocation3 + $0xb0] sm:$0xf]
        %v734 = vld [vmem:[#allocation3 + $0xb8] sm:$0xf]
        %v735 = vld [vmem:[#allocation3 + $0xc0] sm:$0xf]
        %vm736 = vcmask 293888
        %v738 = vsel %vm736, %v710, 0
        %vm740 = vcmask 1043456
        %v742 = vsel %vm740, %v731, 0
        %v745 = vsel %vm740, %v732, 0
        %v748 = vsel %vm740, %v733, 0
        %v751 = vsel %vm740, %v734, 0
        %v754 = vsel %vm740, %v735, 0
        %756 = vmatprep.subr.mxu0 0.0
        %757 = vmatpush1.msra.mxu0 0.0
        %758 = vmatprep.subr.mxu0 0.0
        %759 = vmatpush1.msra.mxu0 0.0
        %760 = vmatprep.subr.mxu0 0.0
        %761 = vmatpush1.msra.mxu0 0.0
        %762 = vmatprep.subr.mxu0 0.0
        %763 = vmatpush1.msra.mxu0 0.0
        %764 = vmatprep.subr.mxu0 0.0
        %765 = vmatpush1.msra.mxu0 0.0
        %766 = vmatprep.subr.mxu0 0.0
        %767 = vmatpush1.msra.mxu0 0.0
        %768 = vmatprep.subr.mxu0 0.0
        %769 = vmatpush1.msra.mxu0 0.0
        %770 = vmatprep.subr.mxu0 0.0
        %771 = vmatpush1.msra.mxu0 0.0
        %772 = vmatprep.subr.mxu0 0.0
        %773 = vmatpush1.msra.mxu0 0.0
        %774 = vmatprep.subr.mxu0 0.0
        %775 = vmatpush1.msra.mxu0 0.0
        %776 = vmatprep.subr.mxu0 0.0
        %777 = vmatpush1.msra.mxu0 0.0
        %778 = vmatprep.subr.mxu0 %v745
        %779 = vmatpush1.msra.mxu0 %v742
        %780 = vmatprep.subr.mxu0 %v727
        %781 = vmatpush1.msra.mxu0 %v726
        %782 = vmatprep.subr.mxu0 %v722
        %783 = vmatpush1.msra.mxu0 %v721
        %784 = vmatprep.subr.mxu0 %v717
        %785 = vmatpush1.msra.mxu0 %v716
        %786 = vmatprep.subr.mxu0 %v712
        %787 = vmatpush1.msra.mxu0 %v711
        %788 = vmatprep.subr.mxu0 0.0
        %789 = vmatpush2.msra.mxu0 0.0
        %790 = vmatprep.subr.mxu0 0.0
        %791 = vmatpush2.msra.mxu0 0.0
        %792 = vmatprep.subr.mxu0 0.0
        %793 = vmatpush2.msra.mxu0 0.0
        %794 = vmatprep.subr.mxu0 0.0
        %795 = vmatpush2.msra.mxu0 0.0
        %796 = vmatprep.subr.mxu0 0.0
        %797 = vmatpush2.msra.mxu0 0.0
        %798 = vmatprep.subr.mxu0 0.0
        %799 = vmatpush2.msra.mxu0 0.0
        %800 = vmatprep.subr.mxu0 0.0
        %801 = vmatpush2.msra.mxu0 0.0
        %802 = vmatprep.subr.mxu0 0.0
        %803 = vmatpush2.msra.mxu0 0.0
        %804 = vmatprep.subr.mxu0 0.0
        %805 = vmatpush2.msra.mxu0 0.0
        %806 = vmatprep.subr.mxu0 0.0
        %807 = vmatpush2.msra.mxu0 0.0
        %808 = vmatprep.subr.mxu0 0.0
        %809 = vmatpush2.msra.mxu0 0.0
        %810 = vmatprep.subr.mxu0 0.0
        %811 = vmatpush2.msra.mxu0 0.0
        %812 = vmatprep.subr.mxu0 0.0
        %813 = vmatpush2.msra.mxu0 0.0
        %814 = vmatprep.subr.mxu0 0.0
        %815 = vmatpush2.msra.mxu0 0.0
        %816 = vmatprep.subr.mxu0 0.0
        %817 = vmatpush2.msra.mxu0 0.0
        %818 = vmatprep.subr.mxu0 0.0
        %819 = vmatpush2.msra.mxu0 0.0
        %820 = vmatprep.mubr.f32.mxu0 0.0
        %821 = vmatmul.mubr.f32.gmra.mxu0 %v738
        %v822 = vpop.f32.mrf.mxu0
        %v823 = vadd.f32 0.0, %v822
        %v824 = vpop.f32.mrf.mxu0
        %v825 = vadd.f32 0.0, %v824
        %826 = vdwg.mxu0
        %827 = vmatprep.subr.mxu0 0.0
        %828 = vmatpush1.msra.mxu0 0.0
        %829 = vmatprep.subr.mxu0 0.0
        %830 = vmatpush1.msra.mxu0 0.0
        %831 = vmatprep.subr.mxu0 0.0
        %832 = vmatpush1.msra.mxu0 0.0
        %833 = vmatprep.subr.mxu0 0.0
        %834 = vmatpush1.msra.mxu0 0.0
        %835 = vmatprep.subr.mxu0 0.0
        %836 = vmatpush1.msra.mxu0 0.0
        %837 = vmatprep.subr.mxu0 0.0
        %838 = vmatpush1.msra.mxu0 0.0
        %839 = vmatprep.subr.mxu0 0.0
        %840 = vmatpush1.msra.mxu0 0.0
        %841 = vmatprep.subr.mxu0 0.0
        %842 = vmatpush1.msra.mxu0 0.0
        %843 = vmatprep.subr.mxu0 0.0
        %844 = vmatpush1.msra.mxu0 0.0
        %845 = vmatprep.subr.mxu0 0.0
        %846 = vmatpush1.msra.mxu0 0.0
        %847 = vmatprep.subr.mxu0 0.0
        %848 = vmatpush1.msra.mxu0 0.0
        %849 = vmatprep.subr.mxu0 %v751
        %850 = vmatpush1.msra.mxu0 %v748
        %851 = vmatprep.subr.mxu0 %v729
        %852 = vmatpush1.msra.mxu0 %v728
        %853 = vmatprep.subr.mxu0 %v724
        %854 = vmatpush1.msra.mxu0 %v723
        %855 = vmatprep.subr.mxu0 %v719
        %856 = vmatpush1.msra.mxu0 %v718
        %857 = vmatprep.subr.mxu0 %v714
        %858 = vmatpush1.msra.mxu0 %v713
        %859 = vmatprep.subr.mxu0 0.0
        %860 = vmatpush2.msra.mxu0 0.0
        %861 = vmatprep.subr.mxu0 0.0
        %862 = vmatpush2.msra.mxu0 0.0
        %863 = vmatprep.subr.mxu0 0.0
        %864 = vmatpush2.msra.mxu0 0.0
        %865 = vmatprep.subr.mxu0 0.0
        %866 = vmatpush2.msra.mxu0 0.0
        %867 = vmatprep.subr.mxu0 0.0
        %868 = vmatpush2.msra.mxu0 0.0
        %869 = vmatprep.subr.mxu0 0.0
        %870 = vmatpush2.msra.mxu0 0.0
        %871 = vmatprep.subr.mxu0 0.0
        %872 = vmatpush2.msra.mxu0 0.0
        %873 = vmatprep.subr.mxu0 0.0
        %874 = vmatpush2.msra.mxu0 0.0
        %875 = vmatprep.subr.mxu0 0.0
        %876 = vmatpush2.msra.mxu0 0.0
        %877 = vmatprep.subr.mxu0 0.0
        %878 = vmatpush2.msra.mxu0 0.0
        %879 = vmatprep.subr.mxu0 0.0
        %880 = vmatpush2.msra.mxu0 0.0
        %881 = vmatprep.subr.mxu0 0.0
        %882 = vmatpush2.msra.mxu0 0.0
        %883 = vmatprep.subr.mxu0 0.0
        %884 = vmatpush2.msra.mxu0 0.0
        %885 = vmatprep.subr.mxu0 0.0
        %886 = vmatpush2.msra.mxu0 0.0
        %887 = vmatprep.subr.mxu0 0.0
        %888 = vmatpush2.msra.mxu0 0.0
        %889 = vmatprep.subr.mxu0 0.0
        %890 = vmatpush2.msra.mxu0 0.0
        %891 = vmatprep.mubr.f32.mxu0 0.0
        %892 = vmatmul.mubr.f32.gmra.mxu0 %v738
        %v893 = vpop.f32.mrf.mxu0
        %v894 = vadd.f32 0.0, %v893
        %v895 = vpop.f32.mrf.mxu0
        %v896 = vadd.f32 0.0, %v895
        %897 = vdwg.mxu0
        %898 = vmatprep.subr.mxu0 0.0
        %899 = vmatpush1.msra.mxu0 0.0
        %900 = vmatprep.subr.mxu0 0.0
        %901 = vmatpush1.msra.mxu0 0.0
        %902 = vmatprep.subr.mxu0 0.0
        %903 = vmatpush1.msra.mxu0 0.0
        %904 = vmatprep.subr.mxu0 0.0
        %905 = vmatpush1.msra.mxu0 0.0
        %906 = vmatprep.subr.mxu0 0.0
        %907 = vmatpush1.msra.mxu0 0.0
        %908 = vmatprep.subr.mxu0 0.0
        %909 = vmatpush1.msra.mxu0 0.0
        %910 = vmatprep.subr.mxu0 0.0
        %911 = vmatpush1.msra.mxu0 0.0
        %912 = vmatprep.subr.mxu0 0.0
        %913 = vmatpush1.msra.mxu0 0.0
        %914 = vmatprep.subr.mxu0 0.0
        %915 = vmatpush1.msra.mxu0 0.0
        %916 = vmatprep.subr.mxu0 0.0
        %917 = vmatpush1.msra.mxu0 0.0
        %918 = vmatprep.subr.mxu0 0.0
        %919 = vmatpush1.msra.mxu0 0.0
        %920 = vmatprep.subr.mxu0 0.0
        %921 = vmatpush1.msra.mxu0 %v754
        %922 = vmatprep.subr.mxu0 0.0
        %923 = vmatpush1.msra.mxu0 %v730
        %924 = vmatprep.subr.mxu0 0.0
        %925 = vmatpush1.msra.mxu0 %v725
        %926 = vmatprep.subr.mxu0 0.0
        %927 = vmatpush1.msra.mxu0 %v720
        %928 = vmatprep.subr.mxu0 0.0
        %929 = vmatpush1.msra.mxu0 %v715
        %930 = vmatprep.subr.mxu0 0.0
        %931 = vmatpush2.msra.mxu0 0.0
        %932 = vmatprep.subr.mxu0 0.0
        %933 = vmatpush2.msra.mxu0 0.0
        %934 = vmatprep.subr.mxu0 0.0
        %935 = vmatpush2.msra.mxu0 0.0
        %936 = vmatprep.subr.mxu0 0.0
        %937 = vmatpush2.msra.mxu0 0.0
        %938 = vmatprep.subr.mxu0 0.0
        %939 = vmatpush2.msra.mxu0 0.0
        %940 = vmatprep.subr.mxu0 0.0
        %941 = vmatpush2.msra.mxu0 0.0
        %942 = vmatprep.subr.mxu0 0.0
        %943 = vmatpush2.msra.mxu0 0.0
        %944 = vmatprep.subr.mxu0 0.0
        %945 = vmatpush2.msra.mxu0 0.0
        %946 = vmatprep.subr.mxu0 0.0
        %947 = vmatpush2.msra.mxu0 0.0
        %948 = vmatprep.subr.mxu0 0.0
        %949 = vmatpush2.msra.mxu0 0.0
        %950 = vmatprep.subr.mxu0 0.0
        %951 = vmatpush2.msra.mxu0 0.0
        %952 = vmatprep.subr.mxu0 0.0
        %953 = vmatpush2.msra.mxu0 0.0
        %954 = vmatprep.subr.mxu0 0.0
        %955 = vmatpush2.msra.mxu0 0.0
        %956 = vmatprep.subr.mxu0 0.0
        %957 = vmatpush2.msra.mxu0 0.0
        %958 = vmatprep.subr.mxu0 0.0
        %959 = vmatpush2.msra.mxu0 0.0
        %960 = vmatprep.subr.mxu0 0.0
        %961 = vmatpush2.msra.mxu0 0.0
        %962 = vmatprep.mubr.f32.mxu0 0.0
        %963 = vmatmul.mubr.f32.gmra.mxu0 %v738
        %v964 = vpop.f32.mrf.mxu0
        %v965 = vadd.f32 0.0, %v964
        %v966 = vpop.f32.mrf.mxu0
        %967 = vdwg.mxu0
        %s968 = sld [smem:[#allocation4]]
        %v969 = vld [vmem:[%s2] sm:$0xff]
        %v970 = vld [vmem:[%s2 + $0x8] sm:$0xff]
        %v971 = vld [vmem:[%s2 + $0x10] sm:$0xff]
        %v972 = vld [vmem:[%s2 + $0x18] sm:$0xff]
        %v973 = vld [vmem:[%s2 + $0x20] sm:$0xff]
        %v974 = vld [vmem:[%s2 + $0x28] sm:$0xff]
        %v975 = vld [vmem:[%s2 + $0x30] sm:$0xff]
        %v976 = vld [vmem:[%s2 + $0x38] sm:$0xff]
        %v977 = vld [vmem:[%s2 + $0x40] sm:$0xff]
        %v978 = vld [vmem:[%s2 + $0x48] sm:$0xff]
        %v979 = vld [vmem:[%s2 + $0x50] sm:$0xff]
        %v980 = vld [vmem:[%s2 + $0x58] sm:$0xff]
        %v981 = vld [vmem:[%s2 + $0x60] sm:$0xff]
        %v982 = vld [vmem:[%s2 + $0x68] sm:$0xff]
        %v983 = vld [vmem:[%s2 + $0x70] sm:$0xff]
        %v984 = vld [vmem:[%s2 + $0x78] sm:$0xff]
        %v985 = vld [vmem:[%s2 + $0x80] sm:$0xff]
        %v986 = vld [vmem:[%s2 + $0x88] sm:$0xff]
        %v987 = vld [vmem:[%s2 + $0x90] sm:$0xff]
        %v988 = vld [vmem:[%s2 + $0x98] sm:$0xff]
        %v989 = vld [vmem:[%s2 + $0xa0] sm:$0xff]
        %v990 = vld [vmem:[%s2 + $0xa8] sm:$0xff]
        %v991 = vld [vmem:[%s2 + $0xb0] sm:$0xff]
        %v992 = vld [vmem:[%s2 + $0xb8] sm:$0xff]
        %v993 = vld [vmem:[%s2 + $0xc0] sm:$0xff]
        %v994 = vld [vmem:[%s2 + $0xc8] sm:$0xff]
        %v995 = vld [vmem:[%s2 + $0xd0] sm:$0xff]
        %v996 = vld [vmem:[%s2 + $0xd8] sm:$0xff]
        %v997 = vld [vmem:[%s2 + $0xe0] sm:$0xff]
        %v998 = vld [vmem:[%s2 + $0xe8] sm:$0xff]
        %v999 = vld [vmem:[%s2 + $0xf0] sm:$0xff]
        %v1000 = vld [vmem:[%s2 + $0xf8] sm:$0xff]
        %1001 = vmatprep.subr.mxu0 0.0
        %1002 = vmatpush1.msra.mxu0 %v984
        %1003 = vmatprep.subr.mxu0 0.0
        %1004 = vmatpush1.msra.mxu0 %v983
        %1005 = vmatprep.subr.mxu0 0.0
        %1006 = vmatpush1.msra.mxu0 %v982
        %1007 = vmatprep.subr.mxu0 0.0
        %1008 = vmatpush1.msra.mxu0 %v981
        %1009 = vmatprep.subr.mxu0 0.0
        %1010 = vmatpush1.msra.mxu0 %v980
        %1011 = vmatprep.subr.mxu0 0.0
        %1012 = vmatpush1.msra.mxu0 %v979
        %1013 = vmatprep.subr.mxu0 0.0
        %1014 = vmatpush1.msra.mxu0 %v978
        %1015 = vmatprep.subr.mxu0 0.0
        %1016 = vmatpush1.msra.mxu0 %v977
        %1017 = vmatprep.subr.mxu0 0.0
        %1018 = vmatpush1.msra.mxu0 %v976
        %1019 = vmatprep.subr.mxu0 0.0
        %1020 = vmatpush1.msra.mxu0 %v975
        %1021 = vmatprep.subr.mxu0 0.0
        %1022 = vmatpush1.msra.mxu0 %v974
        %1023 = vmatprep.subr.mxu0 0.0
        %1024 = vmatpush1.msra.mxu0 %v973
        %1025 = vmatprep.subr.mxu0 0.0
        %1026 = vmatpush1.msra.mxu0 %v972
        %1027 = vmatprep.subr.mxu0 0.0
        %1028 = vmatpush1.msra.mxu0 %v971
        %1029 = vmatprep.subr.mxu0 0.0
        %1030 = vmatpush1.msra.mxu0 %v970
        %1031 = vmatprep.subr.mxu0 0.0
        %1032 = vmatpush1.msra.mxu0 %v969
        %1033 = vmatprep.subr.mxu0 0.0
        %1034 = vmatpush2.msra.mxu0 %v1000
        %1035 = vmatprep.subr.mxu0 0.0
        %1036 = vmatpush2.msra.mxu0 %v999
        %1037 = vmatprep.subr.mxu0 0.0
        %1038 = vmatpush2.msra.mxu0 %v998
        %1039 = vmatprep.subr.mxu0 0.0
        %1040 = vmatpush2.msra.mxu0 %v997
        %1041 = vmatprep.subr.mxu0 0.0
        %1042 = vmatpush2.msra.mxu0 %v996
        %1043 = vmatprep.subr.mxu0 0.0
        %1044 = vmatpush2.msra.mxu0 %v995
        %1045 = vmatprep.subr.mxu0 0.0
        %1046 = vmatpush2.msra.mxu0 %v994
        %1047 = vmatprep.subr.mxu0 0.0
        %1048 = vmatpush2.msra.mxu0 %v993
        %1049 = vmatprep.subr.mxu0 0.0
        %1050 = vmatpush2.msra.mxu0 %v992
        %1051 = vmatprep.subr.mxu0 0.0
        %1052 = vmatpush2.msra.mxu0 %v991
        %1053 = vmatprep.subr.mxu0 0.0
        %1054 = vmatpush2.msra.mxu0 %v990
        %1055 = vmatprep.subr.mxu0 0.0
        %1056 = vmatpush2.msra.mxu0 %v989
        %1057 = vmatprep.subr.mxu0 0.0
        %1058 = vmatpush2.msra.mxu0 %v988
        %1059 = vmatprep.subr.mxu0 0.0
        %1060 = vmatpush2.msra.mxu0 %v987
        %1061 = vmatprep.subr.mxu0 0.0
        %1062 = vmatpush2.msra.mxu0 %v986
        %1063 = vmatprep.subr.mxu0 0.0
        %1064 = vmatpush2.msra.mxu0 %v985
        %1065 = vmatprep.mubr.f32.mxu0 %v825
        %1066 = vmatmul.mubr.f32.gmra.mxu0 %v823
        %v1067 = vpop.f32.mrf.mxu0
        %v1068 = vadd.f32 0.0, %v1067
        %v1069 = vpop.f32.mrf.mxu0
        %1070 = vdwg.mxu0
        %vm1071 = vcmp.ge.f32.partialorder %v1068, 0.0
        %v1072 = vstv %s968
        %v1073 = vmul.f32 %v1072, %v1068
        %v1074 = vsel %vm1071, %v1068, %v1073
        %vm1075 = vcmask 523264
        %1076 = vst.msk [vmem:[%s248] sm:$0xff] %vm1075, %v1074
        %v1077 = vld [vmem:[%s2] sm:$0xff]
        %v1078 = vld [vmem:[%s2 + $0x8] sm:$0xff]
        %v1079 = vld [vmem:[%s2 + $0x10] sm:$0xff]
        %v1080 = vld [vmem:[%s2 + $0x18] sm:$0xff]
        %v1081 = vld [vmem:[%s2 + $0x20] sm:$0xff]
        %v1082 = vld [vmem:[%s2 + $0x28] sm:$0xff]
        %v1083 = vld [vmem:[%s2 + $0x30] sm:$0xff]
        %v1084 = vld [vmem:[%s2 + $0x38] sm:$0xff]
        %v1085 = vld [vmem:[%s2 + $0x40] sm:$0xff]
        %v1086 = vld [vmem:[%s2 + $0x48] sm:$0xff]
        %v1087 = vld [vmem:[%s2 + $0x50] sm:$0xff]
        %v1088 = vld [vmem:[%s2 + $0x58] sm:$0xff]
        %v1089 = vld [vmem:[%s2 + $0x60] sm:$0xff]
        %v1090 = vld [vmem:[%s2 + $0x68] sm:$0xff]
        %v1091 = vld [vmem:[%s2 + $0x70] sm:$0xff]
        %v1092 = vld [vmem:[%s2 + $0x78] sm:$0xff]
        %v1093 = vld [vmem:[%s2 + $0x80] sm:$0xff]
        %v1094 = vld [vmem:[%s2 + $0x88] sm:$0xff]
        %v1095 = vld [vmem:[%s2 + $0x90] sm:$0xff]
        %v1096 = vld [vmem:[%s2 + $0x98] sm:$0xff]
        %v1097 = vld [vmem:[%s2 + $0xa0] sm:$0xff]
        %v1098 = vld [vmem:[%s2 + $0xa8] sm:$0xff]
        %v1099 = vld [vmem:[%s2 + $0xb0] sm:$0xff]
        %v1100 = vld [vmem:[%s2 + $0xb8] sm:$0xff]
        %v1101 = vld [vmem:[%s2 + $0xc0] sm:$0xff]
        %v1102 = vld [vmem:[%s2 + $0xc8] sm:$0xff]
        %v1103 = vld [vmem:[%s2 + $0xd0] sm:$0xff]
        %v1104 = vld [vmem:[%s2 + $0xd8] sm:$0xff]
        %v1105 = vld [vmem:[%s2 + $0xe0] sm:$0xff]
        %v1106 = vld [vmem:[%s2 + $0xe8] sm:$0xff]
        %v1107 = vld [vmem:[%s2 + $0xf0] sm:$0xff]
        %v1108 = vld [vmem:[%s2 + $0xf8] sm:$0xff]
        %1112 = vrot.lane.b32.xlu0 %v894, 112
        %v1113 = vpop.permute.xlu0 %1112
        %1114 = vrot.lane.b32.xlu0 %v896, 112
        %v1115 = vpop.permute.xlu0 %1114
        %1116 = vrot.lane.b32.xlu0 %v965, 112
        %v1117 = vpop.permute.xlu0 %1116
        %v1118 = vsel %vm479, %v1113, %v1115
        %v1119 = vsel %vm479, %v1115, %v1117
        %1122 = vmatprep.subr.mxu0 0.0
        %1123 = vmatpush1.msra.mxu0 %v1092
        %1124 = vmatprep.subr.mxu0 0.0
        %1125 = vmatpush1.msra.mxu0 %v1091
        %1126 = vmatprep.subr.mxu0 0.0
        %1127 = vmatpush1.msra.mxu0 %v1090
        %1128 = vmatprep.subr.mxu0 0.0
        %1129 = vmatpush1.msra.mxu0 %v1089
        %1130 = vmatprep.subr.mxu0 0.0
        %1131 = vmatpush1.msra.mxu0 %v1088
        %1132 = vmatprep.subr.mxu0 0.0
        %1133 = vmatpush1.msra.mxu0 %v1087
        %1134 = vmatprep.subr.mxu0 0.0
        %1135 = vmatpush1.msra.mxu0 %v1086
        %1136 = vmatprep.subr.mxu0 0.0
        %1137 = vmatpush1.msra.mxu0 %v1085
        %1138 = vmatprep.subr.mxu0 0.0
        %1139 = vmatpush1.msra.mxu0 %v1084
        %1140 = vmatprep.subr.mxu0 0.0
        %1141 = vmatpush1.msra.mxu0 %v1083
        %1142 = vmatprep.subr.mxu0 0.0
        %1143 = vmatpush1.msra.mxu0 %v1082
        %1144 = vmatprep.subr.mxu0 0.0
        %1145 = vmatpush1.msra.mxu0 %v1081
        %1146 = vmatprep.subr.mxu0 0.0
        %1147 = vmatpush1.msra.mxu0 %v1080
        %1148 = vmatprep.subr.mxu0 0.0
        %1149 = vmatpush1.msra.mxu0 %v1079
        %1150 = vmatprep.subr.mxu0 0.0
        %1151 = vmatpush1.msra.mxu0 %v1078
        %1152 = vmatprep.subr.mxu0 0.0
        %1153 = vmatpush1.msra.mxu0 %v1077
        %1154 = vmatprep.subr.mxu0 0.0
        %1155 = vmatpush2.msra.mxu0 %v1108
        %1156 = vmatprep.subr.mxu0 0.0
        %1157 = vmatpush2.msra.mxu0 %v1107
        %1158 = vmatprep.subr.mxu0 0.0
        %1159 = vmatpush2.msra.mxu0 %v1106
        %1160 = vmatprep.subr.mxu0 0.0
        %1161 = vmatpush2.msra.mxu0 %v1105
        %1162 = vmatprep.subr.mxu0 0.0
        %1163 = vmatpush2.msra.mxu0 %v1104
        %1164 = vmatprep.subr.mxu0 0.0
        %1165 = vmatpush2.msra.mxu0 %v1103
        %1166 = vmatprep.subr.mxu0 0.0
        %1167 = vmatpush2.msra.mxu0 %v1102
        %1168 = vmatprep.subr.mxu0 0.0
        %1169 = vmatpush2.msra.mxu0 %v1101
        %1170 = vmatprep.subr.mxu0 0.0
        %1171 = vmatpush2.msra.mxu0 %v1100
        %1172 = vmatprep.subr.mxu0 0.0
        %1173 = vmatpush2.msra.mxu0 %v1099
        %1174 = vmatprep.subr.mxu0 0.0
        %1175 = vmatpush2.msra.mxu0 %v1098
        %1176 = vmatprep.subr.mxu0 0.0
        %1177 = vmatpush2.msra.mxu0 %v1097
        %1178 = vmatprep.subr.mxu0 0.0
        %1179 = vmatpush2.msra.mxu0 %v1096
        %1180 = vmatprep.subr.mxu0 0.0
        %1181 = vmatpush2.msra.mxu0 %v1095
        %1182 = vmatprep.subr.mxu0 0.0
        %1183 = vmatpush2.msra.mxu0 %v1094
        %1184 = vmatprep.subr.mxu0 0.0
        %1185 = vmatpush2.msra.mxu0 %v1093
        %1186 = vmatprep.mubr.f32.mxu0 %v1119
        %1187 = vmatmul.mubr.f32.gmra.mxu0 %v1118
        %v1188 = vpop.f32.mrf.mxu0
        %v1189 = vadd.f32 0.0, %v1188
        %v1190 = vpop.f32.mrf.mxu0
        %1191 = vdwg.mxu0
        %vm1192 = vcmp.ge.f32.partialorder %v1189, 0.0
        %v1193 = vmul.f32 %v1072, %v1189
        %v1194 = vsel %vm1192, %v1189, %v1193
        %1196 = vrot.lane.b32.xlu0 %v1194, 64
        %v1197 = vpop.permute.xlu0 %1196
        %vm1199 = vcmask 1048064
        %1200 = vst.msk [vmem:[%s248] sm:$0xff] %vm1199, %v1197
        %s1201 = sand.u32 %s160, 1
        %s1202 = scalar_lea.sflag [#allocation6], %s1201
        %s1203 = sand.u32 %s160, 1
        %s1204 = smul.addr %s1203, 8
        %s1205 = scalar_lea.vmem [#allocation5], %s1204
        // Predicated region
        $region45: #{tpu_custom_call.1} parent=43 // pred_check
          %p1206 = pneg %p170
        $region46: #{tpu_custom_call.1} parent=43 // pred_check_branch
          %1208 = sbr.rel (%p1206) target = $region48
        $region47: #{tpu_custom_call.1} parent=43 // pred_region
          %s1210 = ssub.s32 128, 128
          %1211 = vsyncadd %s1202, %s1210
          %s1212 = smul.addr %s21, 128
          %s1213 = scalar_lea.hbm %s6, %s1212
          %s1215 = sshll.u32 %s1205, 4
          %s1216 = int_to_ptr.vmem [resolvable:$true] %s1215
          %1218 = dma.vmem_to_hbm [thread:$0]  %s1216, 128, %s1213, %s1202
        $region48: #{tpu_custom_call.1} parent=43 // pred_fallthru
          _
      $region44: #{tpu_custom_call.1} parent=5 // pred_fallthru
        _
      %p1219 = scmp.le.s32.totalorder 2, %s16
      // Predicated region
      $region49: #{tpu_custom_call.1} parent=5 // pred_check
        %p1220 = pneg %p1219
      $region50: #{tpu_custom_call.1} parent=5 // pred_check_branch
        %1222 = sbr.rel (%p1220) target = $region52
      $region51: #{tpu_custom_call.1} parent=5 // pred_region
        %s1223 = ssub.s32 %s16, 2
        // Predicated region
        $region53: #{tpu_custom_call.1} parent=51 // pred_check
          %p1224 = pneg %p176
        $region54: #{tpu_custom_call.1} parent=51 // pred_check_branch
          %1226 = sbr.rel (%p1224) target = $region56
        $region55: #{tpu_custom_call.1} parent=51 // pred_region
          %s1227 = sand.u32 %s161, 1
          %s1228 = scalar_lea.sflag [#allocation6], %s1227
          %s1229 = sand.u32 %s161, 1
          %s1230 = smul.addr %s1229, 8
          %s1231 = scalar_lea.vmem [#allocation5], %s1230
          %1232 = dma.done %s1228, 128
        $region56: #{tpu_custom_call.1} parent=51 // pred_fallthru
          _
      $region52: #{tpu_custom_call.1} parent=5 // pred_fallthru
        _
    $region6: #{tpu_custom_call.1} parent=1 // loop_footer
      %s20 = sadd.s32 1, %s16
    $region7: #{tpu_custom_call.1} parent=1 // loop_footer_branch
      %15 = sbr.rel target = $region3
    $region8: #{tpu_custom_call.1} parent=1 // loop_exit
      _
    %1233 = vsyncpa [#allocation6], 1
    %s1234 = scalar_lea.sflag [#allocation6], 1
    %1235 = vsyncpa %s1234, 1

</llo_original>
